<compile_context>
chip_gen: v7x
topology: tpu7x:2x2x1
jax: 0.10.0
libtpu: 0.0.40
codegen_flags: <defaults>
</compile_context>

<pallas_src>
import functools

import jax
import jax.numpy as jnp
from jax.experimental import pallas as pl
from jax.experimental.pallas import tpu as pltpu


_MXU_ROWS = 8  # sublane-aligned LHS rows for the in-kernel MXU contractions


def _round_up(x, m):
    return ((x + m - 1) // m) * m


def _attn_pool_kernel(hidden_ref, mask_ref, wq_ref,
                      pooled_ref, attn_ref, asum_ref, *, seq_valid):
    # hidden_ref: (Bt, Sp, Hp) bf16 (production) or f32 (debug)
    # mask_ref:   (Bt, Sp)     f32 (1 = keep, 0 = masked; padded slots are 0)
    # wq_ref:     (1, Hp)      same dtype as hidden (resident: W @ query)
    # pooled_ref: (Bt, Hp) f32, attn_ref: (Bt, Sp) f32, asum_ref: (Bt, 1) f32
    f32 = jnp.float32
    h = hidden_ref[...]
    m = mask_ref[...]
    wq = wq_ref[...]
    bt, sp, hp = h.shape
    use_mxu = h.dtype != f32                # static branch: bf16 production path

    # scores[b, s] = <hidden[b, s, :], W @ q>   (the b.q constant cancels in softmax)
    if use_mxu:
        wq_b = jnp.broadcast_to(wq.reshape(1, 1, hp), (bt, _MXU_ROWS, hp))
        scores = jnp.einsum("bkh,bsh->bks", wq_b, h,
                            preferred_element_type=f32)[:, 0, :]      # (Bt, Sp) f32
    else:
        scores = jnp.sum(h * wq.reshape(1, 1, hp), axis=-1)           # (Bt, Sp) f32

    keep = m > f32(0.5)
    if sp == seq_valid:
        masked_scores = jnp.where(keep, scores, f32(-1e32))
    else:
        # Data-masked slots get the reference's -1e32; pure sequence padding
        # gets the most-negative finite f32 so its exp is exactly 0 and even
        # fully-masked rows softmax to the reference 1/seq_valid.
        col = jax.lax.broadcasted_iota(jnp.int32, scores.shape, 1)
        fill = jnp.where(col < seq_valid, f32(-1e32),
                         f32(jnp.finfo(jnp.float32).min))
        masked_scores = jnp.where(keep, scores, fill)

    # Lane-dense masked softmax over the sequence axis (S on lanes), all f32.
    mx = jnp.max(masked_scores, axis=-1, keepdims=True)               # (Bt, 1)
    e = jnp.exp(masked_scores - mx)                                   # (Bt, Sp)
    denom = jnp.sum(e, axis=-1, keepdims=True)                        # (Bt, 1)
    attn = e * pl.reciprocal(denom, approx=False)
    attn_ref[...] = attn

    masked_attn = jnp.where(keep, attn, f32(0.0))                     # (Bt, Sp)
    asum_ref[...] = jnp.sum(masked_attn, axis=-1, keepdims=True)      # (Bt, 1)

    # pooled[b, :] = sum_s masked_attn[b, s] * hidden[b, s, :]
    if use_mxu:
        p = jnp.broadcast_to(masked_attn[:, None, :], (bt, _MXU_ROWS, sp))
        pooled = jnp.einsum("bqs,bsh->bqh", p.astype(h.dtype), h,
                            preferred_element_type=f32)[:, 0, :]      # (Bt, Hp)
    else:
        pooled = jnp.sum(masked_attn[:, :, None] * h, axis=1)         # (Bt, Hp)
    pooled_ref[...] = pooled


def _choose_tiling(batch, s_pad, h_pad, hidden_itemsize, block_b=None):
    """Pick (block_b, padded_batch, vmem_limit_bytes), generation-aware."""
    try:
        vmem_cap = int(pltpu.get_tpu_info().vmem_capacity_bytes)
    except Exception:
        vmem_cap = 64 * 1024 * 1024        # conservative fallback (v7x per-TC VMEM)

    # Double-buffered bytes per batch row across every streamed buffer.
    per_row = 2 * (s_pad * h_pad * hidden_itemsize      # hidden stream
                   + s_pad * 4                          # mask (f32)
                   + s_pad * 4                          # attn scores out (f32)
                   + h_pad * 4                          # pooled out (f32)
                   + 128 * 4)                           # attn row-sum out (lane padded)

    # Keep the double-buffered streams <= 48 MiB and <= 3/8 of physical VMEM
    # (v7x has only 64 MiB per TensorCore; v5e/v6e have 128 MiB).
    budget = min(48 << 20, (vmem_cap * 3) // 8)
    rows_by_vmem = max(8, ((budget // per_row) // 8) * 8)

    if block_b is None:
        # Aim for >= 4 grid steps when the batch allows (pipelining + two TCs
        # on v7x), then among feasible multiples of 8 pick the block wasting
        # the least batch padding (larger block wins ties).
        cap_rows = max(8, _round_up(-(-batch // 4), 8))
        upper = max(8, min(rows_by_vmem, cap_rows))
        best = None
        for cand in range(upper, 7, -8):
            b_pad = _round_up(batch, cand)
            if b_pad // cand < 2:          # never a single mega-step
                b_pad = 2 * cand
            key = (b_pad - batch, -cand)
            if best is None or key < best[0]:
                best = (key, cand, b_pad)
        _, block_b, b_pad = best
    else:
        assert block_b % 8 == 0, "block_b must be a multiple of 8"
        b_pad = _round_up(batch, block_b)
        if b_pad // block_b < 2:
            b_pad = 2 * block_b

    per_step = per_row * block_b
    vmem_limit = int(min(vmem_cap - (8 << 20),
                         max(32 << 20, per_step + (16 << 20))))
    return block_b, b_pad, vmem_limit


def attention_forward(batch_hidden, batch_masks, weight, bias, query,
                      *, stream_dtype=jnp.bfloat16, block_b=None):
    """Pallas TPU implementation of Attention.forward.

    batch_hidden: [B, S, H];  batch_masks: [B, S] bool/{0,1}
    weight [H, H], bias [H], query [H]
    stream_dtype: dtype of the hidden HBM stream inside the kernel.
        bfloat16 (default) = production path (half the HBM traffic, MXU
        contractions); float32 = exact/debug path.
    Returns (batch_outputs [B, H], attn_scores [B, S]) in float32.
    """
    f32 = jnp.float32
    B, S, H = batch_hidden.shape
    weight = weight.astype(f32)
    bias = bias.astype(f32)
    query = query.astype(f32)

    # Precompute wq = W @ q once (kills the per-batch (S,H)@(H,H) key matmul).
    wq = jnp.matmul(weight, query, precision=jax.lax.Precision.HIGHEST)

    # Lane-dense padding: S and H to multiples of 128 (full-lane loads/stores).
    s_pad = _round_up(S, 128)
    h_pad = _round_up(H, 128)
    itemsize = jnp.dtype(stream_dtype).itemsize
    block_b, b_pad, vmem_limit = _choose_tiling(B, s_pad, h_pad, itemsize, block_b)
    grid = (b_pad // block_b,)

    hidden_p = jnp.pad(batch_hidden.astype(stream_dtype),
                       ((0, b_pad - B), (0, s_pad - S), (0, h_pad - H)))
    # TODO(synk): the mask could be shipped as int8 (or replaced by per-row
    # lengths via num_scalar_prefetch) to shave the remaining ~1% of HBM
    # traffic; kept as f32 here to support arbitrary masks with a proven layout.
    mask_p = jnp.pad(batch_masks.astype(f32), ((0, b_pad - B), (0, s_pad - S)))
    wq_p = jnp.pad(wq, (0, h_pad - H)).reshape(1, h_pad).astype(stream_dtype)

    kernel = functools.partial(_attn_pool_kernel, seq_valid=S)

    grid_spec = pltpu.PrefetchScalarGridSpec(
        num_scalar_prefetch=0,
        grid=grid,
        in_specs=[
            pl.BlockSpec((block_b, s_pad, h_pad), lambda i: (i, 0, 0)),  # hidden
            pl.BlockSpec((block_b, s_pad), lambda i: (i, 0)),            # mask
            pl.BlockSpec((1, h_pad), lambda i: (0, 0)),                  # wq (resident)
        ],
        out_specs=[
            pl.BlockSpec((block_b, h_pad), lambda i: (i, 0)),            # pooled
            pl.BlockSpec((block_b, s_pad), lambda i: (i, 0)),            # attn scores
            pl.BlockSpec((block_b, 1), lambda i: (i, 0)),                # attn row-sum
        ],
    )

    pooled, attn, asum = pl.pallas_call(
        kernel,
        grid_spec=grid_spec,
        out_shape=(
            jax.ShapeDtypeStruct((b_pad, h_pad), f32),
            jax.ShapeDtypeStruct((b_pad, s_pad), f32),
            jax.ShapeDtypeStruct((b_pad, 1), f32),
        ),
        compiler_params=pltpu.CompilerParams(
            dimension_semantics=("parallel",),
            vmem_limit_bytes=vmem_limit),
    )(hidden_p, mask_p, wq_p)

    # Epilogue: batch_outputs = masked_attn @ key
    #                        = (masked_attn @ hidden) @ W + (sum_s masked_attn) . b
    pooled = pooled[:B, :H]
    attn_scores = attn[:B, :S]
    asum = asum[:B]
    batch_outputs = (jnp.matmul(pooled, weight,
                                precision=jax.lax.Precision.HIGHEST)
                     + asum * bias.reshape(1, H))
    return batch_outputs, attn_scores


def attention_reference(batch_hidden, batch_masks, weight, bias, query):
    """Pure-JAX reference matching the PyTorch module exactly."""
    key = jnp.matmul(batch_hidden, weight) + bias                    # [B,S,H]
    outputs = jnp.matmul(key, query)                                 # [B,S]
    not_mask = ~(batch_masks.astype(bool))
    masked_outputs = jnp.where(not_mask, jnp.float32(-1e32), outputs)
    attn_scores = jax.nn.softmax(masked_outputs, axis=1)
    masked_attn = jnp.where(not_mask, jnp.float32(0.0), attn_scores)
    batch_outputs = jnp.einsum("bs,bsh->bh", masked_attn, key)
    return batch_outputs, attn_scores


if __name__ == "__main__":
    B, S, H = 2, 8, 32

    root = jax.random.PRNGKey(0)
    k_w, k_b, k_q, k_x = jax.random.split(root, 4)

    # Parameters (normal std=0.05). A non-zero bias is used so the bias /
    # attention-row-sum epilogue is actually exercised (the forward pass is
    # agnostic to the parameter values).
    weight = 0.05 * jax.random.normal(k_w, (H, H), dtype=jnp.float32)
    bias = 0.05 * jax.random.normal(k_b, (H,), dtype=jnp.float32)
    query = 0.05 * jax.random.normal(k_q, (H,), dtype=jnp.float32)

    # Inputs: hidden states + a mask with ragged lengths [8, 5].
    batch_hidden = jax.random.normal(k_x, (B, S, H), dtype=jnp.float32)
    lengths = jnp.array([8, 5], dtype=jnp.int32)
    batch_masks = (jnp.arange(S)[None, :] < lengths[:, None]).astype(jnp.int32)

    ref_out, ref_attn = attention_reference(batch_hidden, batch_masks,
                                            weight, bias, query)

    # 1) Exact/debug path (f32 stream) -- tight check against the reference.
    out32, attn32 = attention_forward(batch_hidden, batch_masks, weight, bias,
                                      query, stream_dtype=jnp.float32)
    out32 = jax.block_until_ready(out32)
    attn32 = jax.block_until_ready(attn32)
    assert jnp.allclose(out32, ref_out, atol=1e-5, rtol=1e-5)
    assert jnp.allclose(attn32, ref_attn, atol=1e-5, rtol=1e-5)

    # 2) Production path (bf16 hidden stream + MXU contractions) -- bf16-level check.
    out16, attn16 = attention_forward(batch_hidden, batch_masks, weight, bias,
                                      query, stream_dtype=jnp.bfloat16)
    out16 = jax.block_until_ready(out16)
    attn16 = jax.block_until_ready(attn16)
    assert jnp.allclose(out16, ref_out, atol=2e-2, rtol=2e-2)
    assert jnp.allclose(attn16, ref_attn, atol=2e-2, rtol=2e-2)

    print("KERNEL_OK")
</pallas_src>

<mosaic_0001>
module attributes {stable_mosaic.version = 11 : i64} {
  func.func @_attn_pool_kernel(%arg0: i32, %arg1: memref<8x128x128xf32, #tpu.memory_space<vmem>>, %arg2: memref<8x128xf32, #tpu.memory_space<vmem>>, %arg3: memref<1x128xf32, #tpu.memory_space<vmem>>, %arg4: memref<8x128xf32, #tpu.memory_space<vmem>>, %arg5: memref<8x128xf32, #tpu.memory_space<vmem>>, %arg6: memref<8x1xf32, #tpu.memory_space<vmem>>) attributes {dimension_semantics = [#tpu.dimension_semantics<parallel>], iteration_bounds = array<i64: 2>, scalar_prefetch = 0 : i64, scratch_operands = 0 : i64, tpu.core_type = #tpu.core_type<tc>, window_params = [{transform_indices = @transform_0, window_bounds = array<i64: 8, 128, 128>}, {transform_indices = @transform_1, window_bounds = array<i64: 8, 128>}, {pipeline_mode = #tpu.pipeline_mode<synchronous>, transform_indices = @transform_2, window_bounds = array<i64: 1, 128>}, {transform_indices = @transform_3, window_bounds = array<i64: 8, 128>}, {transform_indices = @transform_4, window_bounds = array<i64: 8, 128>}, {transform_indices = @transform_5, window_bounds = array<i64: 8, 1>}]} {
    %c0 = arith.constant 0 : index
    %c0_0 = arith.constant 0 : index
    %c0_1 = arith.constant 0 : index
    %0 = vector.load %arg1[%c0, %c0_0, %c0_1] : memref<8x128x128xf32, #tpu.memory_space<vmem>>, vector<8x128x128xf32>
    %c0_2 = arith.constant 0 : index
    %c0_3 = arith.constant 0 : index
    %1 = vector.load %arg2[%c0_2, %c0_3] : memref<8x128xf32, #tpu.memory_space<vmem>>, vector<8x128xf32>
    %c0_4 = arith.constant 0 : index
    %c0_5 = arith.constant 0 : index
    %2 = vector.load %arg3[%c0_4, %c0_5] : memref<1x128xf32, #tpu.memory_space<vmem>>, vector<1x128xf32>
    %3 = vector.shape_cast %2 : vector<1x128xf32> to vector<1x1x128xf32>
    %4 = vector.broadcast %3 : vector<1x1x128xf32> to vector<8x128x128xf32>
    %5 = arith.mulf %0, %4 : vector<8x128x128xf32>
    %cst = arith.constant dense<0.000000e+00> : vector<8x128xf32>
    %6 = vector.multi_reduction <add>, %5, %cst [2] : vector<8x128x128xf32> to vector<8x128xf32>
    %cst_6 = arith.constant 5.000000e-01 : f32
    %7 = vector.broadcast %cst_6 : f32 to vector<8x128xf32>
    %8 = arith.cmpf ogt, %1, %7 : vector<8x128xf32>
    %9 = tpu.iota {dimensions = array<i32: 1>} : vector<8x128xi32>
    %c8_i32 = arith.constant 8 : i32
    %10 = vector.broadcast %c8_i32 : i32 to vector<8x128xi32>
    %11 = arith.cmpi slt, %9, %10 : vector<8x128xi32>
    %cst_7 = arith.constant -1.000000e+32 : f32
    %cst_8 = arith.constant -3.40282347E+38 : f32
    %12 = vector.broadcast %cst_7 : f32 to vector<8x128xf32>
    %13 = vector.broadcast %cst_8 : f32 to vector<8x128xf32>
    %14 = arith.select %11, %12, %13 : vector<8x128xi1>, vector<8x128xf32>
    %15 = arith.select %8, %6, %14 : vector<8x128xi1>, vector<8x128xf32>
    %cst_9 = arith.constant dense<0xFF800000> : vector<8xf32>
    %16 = vector.multi_reduction <maximumf>, %15, %cst_9 [1] : vector<8x128xf32> to vector<8xf32>
    %17 = vector.shape_cast %16 : vector<8xf32> to vector<8x1xf32>
    %18 = vector.broadcast %17 : vector<8x1xf32> to vector<8x128xf32>
    %19 = arith.subf %15, %18 : vector<8x128xf32>
    %20 = math.exp %19 : vector<8x128xf32>
    %cst_10 = arith.constant dense<0.000000e+00> : vector<8xf32>
    %21 = vector.multi_reduction <add>, %20, %cst_10 [1] : vector<8x128xf32> to vector<8xf32>
    %22 = vector.shape_cast %21 : vector<8xf32> to vector<8x1xf32>
    %23 = tpu.reciprocal %22 : vector<8x1xf32> -> vector<8x1xf32>
    %24 = vector.broadcast %23 : vector<8x1xf32> to vector<8x128xf32>
    %25 = arith.mulf %20, %24 : vector<8x128xf32>
    %c0_11 = arith.constant 0 : index
    %c0_12 = arith.constant 0 : index
    %26 = vector.load %arg5[%c0_11, %c0_12] : memref<8x128xf32, #tpu.memory_space<vmem>>, vector<8x128xf32>
    tpu.vector_store %arg5[%c0_11, %c0_12], %25 {strides = array<i32>} : memref<8x128xf32, #tpu.memory_space<vmem>>, vector<8x128xf32>,
    %cst_13 = arith.constant 0.000000e+00 : f32
    %27 = vector.broadcast %cst_13 : f32 to vector<8x128xf32>
    %28 = arith.select %8, %25, %27 : vector<8x128xi1>, vector<8x128xf32>
    %cst_14 = arith.constant dense<0.000000e+00> : vector<8xf32>
    %29 = vector.multi_reduction <add>, %28, %cst_14 [1] : vector<8x128xf32> to vector<8xf32>
    %30 = vector.shape_cast %29 : vector<8xf32> to vector<8x1xf32>
    %c0_15 = arith.constant 0 : index
    %c0_16 = arith.constant 0 : index
    %31 = vector.load %arg6[%c0_15, %c0_16] : memref<8x1xf32, #tpu.memory_space<vmem>>, vector<8x1xf32>
    tpu.vector_store %arg6[%c0_15, %c0_16], %30 {strides = array<i32>} : memref<8x1xf32, #tpu.memory_space<vmem>>, vector<8x1xf32>,
    %32 = vector.shape_cast %28 : vector<8x128xf32> to vector<8x128x1xf32>
    %33 = vector.broadcast %32 : vector<8x128x1xf32> to vector<8x128x128xf32>
    %34 = arith.mulf %33, %0 : vector<8x128x128xf32>
    %cst_17 = arith.constant dense<0.000000e+00> : vector<8x128xf32>
    %35 = vector.multi_reduction <add>, %34, %cst_17 [1] : vector<8x128x128xf32> to vector<8x128xf32>
    %c0_18 = arith.constant 0 : index
    %c0_19 = arith.constant 0 : index
    %36 = vector.load %arg4[%c0_18, %c0_19] : memref<8x128xf32, #tpu.memory_space<vmem>>, vector<8x128xf32>
    tpu.vector_store %arg4[%c0_18, %c0_19], %35 {strides = array<i32>} : memref<8x128xf32, #tpu.memory_space<vmem>>, vector<8x128xf32>,
    return
  }
  func.func @transform_0(%arg0: i32) -> (i32, i32, i32) {
    %c0_i32 = arith.constant 0 : i32
    %c0_i32_0 = arith.constant 0 : i32
    %c0_i32_1 = arith.constant 0 : i32
    return %arg0, %c0_i32, %c0_i32_0 : i32, i32, i32
  }
  func.func @transform_1(%arg0: i32) -> (i32, i32) {
    %c0_i32 = arith.constant 0 : i32
    %c0_i32_0 = arith.constant 0 : i32
    return %arg0, %c0_i32 : i32, i32
  }
  func.func @transform_2(%arg0: i32) -> (i32, i32) {
    %c0_i32 = arith.constant 0 : i32
    %c0_i32_0 = arith.constant 0 : i32
    %c0_i32_1 = arith.constant 0 : i32
    return %c0_i32, %c0_i32_0 : i32, i32
  }
  func.func @transform_3(%arg0: i32) -> (i32, i32) {
    %c0_i32 = arith.constant 0 : i32
    %c0_i32_0 = arith.constant 0 : i32
    return %arg0, %c0_i32 : i32, i32
  }
  func.func @transform_4(%arg0: i32) -> (i32, i32) {
    %c0_i32 = arith.constant 0 : i32
    %c0_i32_0 = arith.constant 0 : i32
    return %arg0, %c0_i32 : i32, i32
  }
  func.func @transform_5(%arg0: i32) -> (i32, i32) {
    %c0_i32 = arith.constant 0 : i32
    %c0_i32_0 = arith.constant 0 : i32
    return %arg0, %c0_i32 : i32, i32
  }
}

</mosaic_0001>

<llo_original>
// kernel: tpu_custom_call.1
$region0: #{tpu_custom_call.1}
  #allocation0 [shape = 'u32[]', space=smem, size = 0x4, offset = 0x4, fixed_abs, tag = 'smem constant byte address 0x4 - core index']
  #allocation1 [shape = 'u32[144,128]{1,0:T(1,128)}', space=vmem, size = 0x12000, scoped, tag = 'internal scratch']
  %s0 = inlined_call_operand.hbm [shape: f32[16,128,128], index: 0, kind: input, shape index: {}]
  %s1 = inlined_call_operand.hbm [shape: f32[16,128], index: 1, kind: input, shape index: {}]
  %s2 = inlined_call_operand.vmem [shape: f32[1,128], index: 2, kind: input, shape index: {}]
  %s3 = inlined_call_operand.hbm [shape: f32[16,128], index: 3, kind: output, shape index: {0}]
  %s4 = inlined_call_operand.hbm [shape: f32[16,128], index: 4, kind: output, shape index: {1}]
  %s5 = inlined_call_operand.vmem [shape: f32[16,1], index: 5, kind: output, shape index: {2}]
  %6 = xla_tuple %s3, %s4, %s5
  %s7 = sld [smem:[#allocation0]]
  $region69: #{tpu_custom_call.1} parent=0
    _
  %s9 = ssub.s32 1, %s7
  %s10 = scalar_select 0, %s9, %s7
  $region1: #{tpu_custom_call.1} parent=0
    #allocation2 [shape = 'u8[1048576]{0}', space=vmem, size = 0x100000, scoped, tag = 'input window, operand 0']
    #allocation3 [shape = 's32[2]{0}', space=sflag, size = 0x8, scoped, tag = 'scoped memory for tpu_custom_call.1']
    #allocation4 [shape = 's32[2]{0}', space=sflag, size = 0x8, scoped, tag = 'scoped memory for tpu_custom_call.1']
    #allocation5 [shape = 'u8[8192]{0}', space=vmem, size = 0x2000, scoped, tag = 'input window, operand 1']
    #allocation6 [shape = 's32[2]{0}', space=sflag, size = 0x8, scoped, tag = 'scoped memory for tpu_custom_call.1']
    #allocation7 [shape = 'u8[8192]{0}', space=vmem, size = 0x2000, scoped, tag = 'output window, operand 0']
    #allocation8 [shape = 'u8[8192]{0}', space=vmem, size = 0x2000, scoped, tag = 'output window, operand 1']
    #allocation9 [shape = 's32[2]{0}', space=sflag, size = 0x8, scoped, tag = 'scoped memory for tpu_custom_call.1']
    %11 = vsyncpa [#allocation3], 0
    %s12 = scalar_lea.sflag [#allocation3], 1
    %13 = vsyncpa %s12, 0
    %14 = vsyncpa [#allocation6], 0
    %s15 = scalar_lea.sflag [#allocation6], 1
    %16 = vsyncpa %s15, 0
    %17 = vsyncpa [#allocation4], 0
    %s18 = scalar_lea.sflag [#allocation4], 1
    %19 = vsyncpa %s18, 0
    %20 = vsyncpa [#allocation9], 0
    %s21 = scalar_lea.sflag [#allocation9], 1
    %22 = vsyncpa %s21, 0
    loop: start=0, step=1, limit=4
    $region2: #{tpu_custom_call.1} parent=1 // loop_pre_header
      _
    $region3: #{tpu_custom_call.1} parent=1 // loop_header
      %s24 = sphi 0, %s28
      %p25 = scmp.ge.s32.totalorder %s24, 4
      %s34 = sphi 0, %s36
      %s37 = sphi 0, %s34
      %s38 = sphi 0, %s37
      %s54 = sphi 0, %s38
      %s60 = sphi 0, %s62
      %s63 = sphi 0, %s60
      %s64 = sphi 0, %s63
      %s80 = sphi 0, %s64
      %s84 = sphi 0, %s84
      %s86 = sphi 0, %s84
      %s87 = sphi 0, %s86
      %s101 = sphi 0, %s87
      %s107 = sphi 0, %s109
      %s110 = sphi 0, %s107
      %s111 = sphi 0, %s110
      %s127 = sphi 0, %s111
      %s133 = sphi 0, %s135
      %s136 = sphi 0, %s133
      %s137 = sphi 0, %s136
      %s153 = sphi 0, %s137
      %s159 = sphi 0, %s161
      %s162 = sphi 0, %s159
      %s163 = sphi 0, %s162
      %s179 = sphi 0, %s163
    $region4: #{tpu_custom_call.1} parent=1 // loop_header_branch
      %27 = sbr.rel (%p25) target = $region8
    $region5: #{tpu_custom_call.1} parent=1 // loop_body
      %s29 = ssub.s32 %s24, 1
      %s30 = ssub.s32 %s24, 2
      %s31 = sadd.s32 %s24, 1
      %s32 = ssub.s32 %s24, %s31
      %p33 = scmp.eq.s32.totalorder %s32, 0
      %s35 = sadd.s32 %s34, 1
      %s36 = scalar_select %p33, %s34, %s35
      %p39 = pneg %p33
      %p40 = scmp.eq.s32.totalorder %s24, 1
      %p41 = por %p39, %p40
      %p42 = scmp.ne.s32.totalorder %s34, %s37
      %p43 = scmp.eq.s32.totalorder %s24, 0
      %p44 = por %p42, %p43
      %p45 = scmp.ne.s32.totalorder %s34, %s37
      %p46 = scmp.eq.s32.totalorder %s29, 1
      %p47 = por %p45, %p46
      %p48 = scmp.ne.s32.totalorder %s37, %s38
      %p49 = scmp.eq.s32.totalorder %s29, 0
      %p50 = por %p48, %p49
      %p51 = scmp.ne.s32.totalorder %s37, %s38
      %p52 = scmp.eq.s32.totalorder %s30, 1
      %p53 = por %p51, %p52
      %p55 = scmp.ne.s32.totalorder %s38, %s54
      %p56 = scmp.eq.s32.totalorder %s30, 0
      %p57 = por %p55, %p56
      %s58 = ssub.s32 %s24, %s31
      %p59 = scmp.eq.s32.totalorder %s58, 0
      %s61 = sadd.s32 %s60, 1
      %s62 = scalar_select %p59, %s60, %s61
      %p65 = pneg %p59
      %p66 = scmp.eq.s32.totalorder %s24, 1
      %p67 = por %p65, %p66
      %p68 = scmp.ne.s32.totalorder %s60, %s63
      %p69 = scmp.eq.s32.totalorder %s24, 0
      %p70 = por %p68, %p69
      %p71 = scmp.ne.s32.totalorder %s60, %s63
      %p72 = scmp.eq.s32.totalorder %s29, 1
      %p73 = por %p71, %p72
      %p74 = scmp.ne.s32.totalorder %s63, %s64
      %p75 = scmp.eq.s32.totalorder %s29, 0
      %p76 = por %p74, %p75
      %p77 = scmp.ne.s32.totalorder %s63, %s64
      %p78 = scmp.eq.s32.totalorder %s30, 1
      %p79 = por %p77, %p78
      %p81 = scmp.ne.s32.totalorder %s64, %s80
      %p82 = scmp.eq.s32.totalorder %s30, 0
      %p83 = por %p81, %p82
      %s85 = sadd.s32 %s84, 1
      %p88 = scmp.eq.s32.totalorder %s24, 1
      %p89 = scmp.ne.s32.totalorder %s84, %s86
      %p90 = scmp.eq.s32.totalorder %s24, 0
      %p91 = por %p89, %p90
      %p92 = scmp.ne.s32.totalorder %s84, %s86
      %p93 = scmp.eq.s32.totalorder %s29, 1
      %p94 = por %p92, %p93
      %p95 = scmp.ne.s32.totalorder %s86, %s87
      %p96 = scmp.eq.s32.totalorder %s29, 0
      %p97 = por %p95, %p96
      %p98 = scmp.ne.s32.totalorder %s86, %s87
      %p99 = scmp.eq.s32.totalorder %s30, 1
      %p100 = por %p98, %p99
      %p102 = scmp.ne.s32.totalorder %s87, %s101
      %p103 = scmp.eq.s32.totalorder %s30, 0
      %p104 = por %p102, %p103
      %s105 = ssub.s32 %s24, %s31
      %p106 = scmp.eq.s32.totalorder %s105, 0
      %s108 = sadd.s32 %s107, 1
      %s109 = scalar_select %p106, %s107, %s108
      %p112 = pneg %p106
      %p113 = scmp.eq.s32.totalorder %s24, 1
      %p114 = por %p112, %p113
      %p115 = scmp.ne.s32.totalorder %s107, %s110
      %p116 = scmp.eq.s32.totalorder %s24, 0
      %p117 = por %p115, %p116
      %p118 = scmp.ne.s32.totalorder %s107, %s110
      %p119 = scmp.eq.s32.totalorder %s29, 1
      %p120 = por %p118, %p119
      %p121 = scmp.ne.s32.totalorder %s110, %s111
      %p122 = scmp.eq.s32.totalorder %s29, 0
      %p123 = por %p121, %p122
      %p124 = scmp.ne.s32.totalorder %s110, %s111
      %p125 = scmp.eq.s32.totalorder %s30, 1
      %p126 = por %p124, %p125
      %p128 = scmp.ne.s32.totalorder %s111, %s127
      %p129 = scmp.eq.s32.totalorder %s30, 0
      %p130 = por %p128, %p129
      %s131 = ssub.s32 %s24, %s31
      %p132 = scmp.eq.s32.totalorder %s131, 0
      %s134 = sadd.s32 %s133, 1
      %s135 = scalar_select %p132, %s133, %s134
      %p138 = pneg %p132
      %p139 = scmp.eq.s32.totalorder %s24, 1
      %p140 = por %p138, %p139
      %p141 = scmp.ne.s32.totalorder %s133, %s136
      %p142 = scmp.eq.s32.totalorder %s24, 0
      %p143 = por %p141, %p142
      %p144 = scmp.ne.s32.totalorder %s133, %s136
      %p145 = scmp.eq.s32.totalorder %s29, 1
      %p146 = por %p144, %p145
      %p147 = scmp.ne.s32.totalorder %s136, %s137
      %p148 = scmp.eq.s32.totalorder %s29, 0
      %p149 = por %p147, %p148
      %p150 = scmp.ne.s32.totalorder %s136, %s137
      %p151 = scmp.eq.s32.totalorder %s30, 1
      %p152 = por %p150, %p151
      %p154 = scmp.ne.s32.totalorder %s137, %s153
      %p155 = scmp.eq.s32.totalorder %s30, 0
      %p156 = por %p154, %p155
      %s157 = ssub.s32 %s24, %s31
      %p158 = scmp.eq.s32.totalorder %s157, 0
      %s160 = sadd.s32 %s159, 1
      %s161 = scalar_select %p158, %s159, %s160
      %p164 = pneg %p158
      %p165 = scmp.eq.s32.totalorder %s24, 1
      %p166 = por %p164, %p165
      %p167 = scmp.ne.s32.totalorder %s159, %s162
      %p168 = scmp.eq.s32.totalorder %s24, 0
      %p169 = por %p167, %p168
      %p170 = scmp.ne.s32.totalorder %s159, %s162
      %p171 = scmp.eq.s32.totalorder %s29, 1
      %p172 = por %p170, %p171
      %p173 = scmp.ne.s32.totalorder %s162, %s163
      %p174 = scmp.eq.s32.totalorder %s29, 0
      %p175 = por %p173, %p174
      %p176 = scmp.ne.s32.totalorder %s162, %s163
      %p177 = scmp.eq.s32.totalorder %s30, 1
      %p178 = por %p176, %p177
      %p180 = scmp.ne.s32.totalorder %s163, %s179
      %p181 = scmp.eq.s32.totalorder %s30, 0
      %p182 = por %p180, %p181
      %p183 = scmp.le.s32.totalorder 1, %s24
      %p184 = scmp.lt.s32.totalorder %s24, 3
      %p185 = pnand %p183, %p184
      %p186 = pneg %p185
      // Predicated region
      $region9: #{tpu_custom_call.1} parent=5 // pred_check
        _
      $region10: #{tpu_custom_call.1} parent=5 // pred_check_branch
        %188 = sbr.rel (%p185) target = $region12
      $region11: #{tpu_custom_call.1} parent=5 // pred_region
        %s189 = ssub.s32 %s24, 1
        // Predicated region
        $region13: #{tpu_custom_call.1} parent=11 // pred_check
          %p190 = pneg %p97
        $region14: #{tpu_custom_call.1} parent=11 // pred_check_branch
          %192 = sbr.rel (%p190) target = $region16
        $region15: #{tpu_custom_call.1} parent=11 // pred_region
          _
        $region16: #{tpu_custom_call.1} parent=11 // pred_fallthru
          _
      $region12: #{tpu_custom_call.1} parent=5 // pred_fallthru
        _
      %p193 = scmp.lt.s32.totalorder %s24, 2
      // Predicated region
      $region17: #{tpu_custom_call.1} parent=5 // pred_check
        %p194 = pneg %p193
      $region18: #{tpu_custom_call.1} parent=5 // pred_check_branch
        %196 = sbr.rel (%p194) target = $region20
      $region19: #{tpu_custom_call.1} parent=5 // pred_region
        // Predicated region
        $region21: #{tpu_custom_call.1} parent=19 // pred_check
          %p197 = pneg %p44
        $region22: #{tpu_custom_call.1} parent=19 // pred_check_branch
          %199 = sbr.rel (%p197) target = $region24
        $region23: #{tpu_custom_call.1} parent=19 // pred_region
          %s200 = sand.u32 %s34, 1
          %s201 = scalar_lea.sflag [#allocation3], %s200
          %s202 = sand.u32 %s34, 1
          %s203 = smul.addr %s202, 1024
          %s204 = scalar_lea.vmem [#allocation2], %s203
          %s205 = smul.u32 8, %s24
          %s207 = ssub.s32 16384, 16384
          %208 = vsyncadd %s201, %s207
          %s209 = smul.addr %s205, 16
          %s210 = smul.addr %s209, 128
          %s211 = scalar_lea.hbm %s0, %s210
          %s212 = sshll.u32 %s204, 4
          %s213 = int_to_ptr.vmem [resolvable:$true] %s212
          %218 = dma.hbm_to_vmem [thread:$0]  %s211, 16384, %s213, %s201, 128, 128, 8
        $region24: #{tpu_custom_call.1} parent=19 // pred_fallthru
          _
        // Predicated region
        $region25: #{tpu_custom_call.1} parent=19 // pred_check
          %p219 = pneg %p70
        $region26: #{tpu_custom_call.1} parent=19 // pred_check_branch
          %221 = sbr.rel (%p219) target = $region28
        $region27: #{tpu_custom_call.1} parent=19 // pred_region
          %s222 = sand.u32 %s60, 1
          %s223 = scalar_lea.sflag [#allocation6], %s222
          %s224 = sand.u32 %s60, 1
          %s225 = smul.addr %s224, 8
          %s226 = scalar_lea.vmem [#allocation5], %s225
          %s228 = ssub.s32 128, 128
          %229 = vsyncadd %s223, %s228
          %s230 = smul.addr %s24, 128
          %s231 = scalar_lea.hbm %s1, %s230
          %s233 = sshll.u32 %s226, 4
          %s234 = int_to_ptr.vmem [resolvable:$true] %s233
          %236 = dma.hbm_to_vmem [thread:$0]  %s231, 128, %s234, %s223
        $region28: #{tpu_custom_call.1} parent=19 // pred_fallthru
          _
      $region20: #{tpu_custom_call.1} parent=5 // pred_fallthru
        _
      %p237 = scmp.le.s32.totalorder 1, %s24
      %p238 = scmp.lt.s32.totalorder %s24, 3
      %p239 = pnand %p237, %p238
      %p240 = pneg %p239
      // Predicated region
      $region29: #{tpu_custom_call.1} parent=5 // pred_check
        _
      $region30: #{tpu_custom_call.1} parent=5 // pred_check_branch
        %242 = sbr.rel (%p239) target = $region32
      $region31: #{tpu_custom_call.1} parent=5 // pred_region
        %s243 = ssub.s32 %s24, 1
        %s244 = sand.u32 %s37, 1
        %s245 = scalar_lea.sflag [#allocation3], %s244
        %s246 = sand.u32 %s37, 1
        %s247 = smul.addr %s246, 1024
        %s248 = scalar_lea.vmem [#allocation2], %s247
        // Predicated region
        $region33: #{tpu_custom_call.1} parent=31 // pred_check
          %p249 = pneg %p50
        $region34: #{tpu_custom_call.1} parent=31 // pred_check_branch
          %251 = sbr.rel (%p249) target = $region36
        $region35: #{tpu_custom_call.1} parent=31 // pred_region
          %252 = dma.done %s245, 16384
        $region36: #{tpu_custom_call.1} parent=31 // pred_fallthru
          _
        %s253 = sand.u32 %s63, 1
        %s254 = scalar_lea.sflag [#allocation6], %s253
        %s255 = sand.u32 %s63, 1
        %s256 = smul.addr %s255, 8
        %s257 = scalar_lea.vmem [#allocation5], %s256
        // Predicated region
        $region37: #{tpu_custom_call.1} parent=31 // pred_check
          %p258 = pneg %p76
        $region38: #{tpu_custom_call.1} parent=31 // pred_check_branch
          %260 = sbr.rel (%p258) target = $region40
        $region39: #{tpu_custom_call.1} parent=31 // pred_region
          %261 = dma.done %s254, 128
        $region40: #{tpu_custom_call.1} parent=31 // pred_fallthru
          _
        %s262 = sand.u32 %s37, 1
        %s263 = scalar_lea.sflag [#allocation3], %s262
        %s264 = sand.u32 %s37, 1
        %s265 = smul.addr %s264, 1024
        %s266 = scalar_lea.vmem [#allocation2], %s265
        %p267 = pneg %p50
        %p268 = pneg %p47
        %s269 = sand.u32 %s63, 1
        %s270 = scalar_lea.sflag [#allocation6], %s269
        %s271 = sand.u32 %s63, 1
        %s272 = smul.addr %s271, 8
        %s273 = scalar_lea.vmem [#allocation5], %s272
        %p274 = pneg %p76
        %p275 = pneg %p73
        %p276 = pneg %p97
        %p277 = pneg %p94
        %p278 = pneg %p123
        %p279 = pneg %p120
        %s280 = sand.u32 %s110, 1
        %s281 = scalar_lea.sflag [#allocation4], %s280
        %s282 = sand.u32 %s110, 1
        %s283 = smul.addr %s282, 8
        %s284 = scalar_lea.vmem [#allocation7], %s283
        %p285 = pneg %p149
        %p286 = pneg %p146
        %s287 = sand.u32 %s136, 1
        %s288 = scalar_lea.sflag [#allocation9], %s287
        %s289 = sand.u32 %s136, 1
        %s290 = smul.addr %s289, 8
        %s291 = scalar_lea.vmem [#allocation8], %s290
        %p292 = pneg %p175
        %p293 = pneg %p172
        %p294 = scmp.lt.s32.totalorder %s29, 1
        %s295 = scalar_select %p294, %s29, 1
        %s296 = smul.addr %s295, 8
        %s297 = scalar_lea.vmem %s5, %s296
        %s298 = smul.u32 8, %s29
        %p299 = scmp.lt.s32.totalorder %s29, 1
        %s300 = scalar_select %p299, %s29, 1
        %s301 = smul.addr %s300, 8
        %s302 = scalar_lea.vmem %s5, %s301
        %v303 = vld [vmem:[%s248] sm:$0xff]
        %v304 = vld [vmem:[%s248 + $0x8] sm:$0xff]
        %v305 = vld [vmem:[%s248 + $0x10] sm:$0xff]
        %v306 = vld [vmem:[%s248 + $0x18] sm:$0xff]
        %v307 = vld [vmem:[%s248 + $0x20] sm:$0xff]
        %v308 = vld [vmem:[%s248 + $0x28] sm:$0xff]
        %v309 = vld [vmem:[%s248 + $0x30] sm:$0xff]
        %v310 = vld [vmem:[%s248 + $0x38] sm:$0xff]
        %v311 = vld [vmem:[%s248 + $0x40] sm:$0xff]
        %v312 = vld [vmem:[%s248 + $0x48] sm:$0xff]
        %v313 = vld [vmem:[%s248 + $0x50] sm:$0xff]
        %v314 = vld [vmem:[%s248 + $0x58] sm:$0xff]
        %v315 = vld [vmem:[%s248 + $0x60] sm:$0xff]
        %v316 = vld [vmem:[%s248 + $0x68] sm:$0xff]
        %v317 = vld [vmem:[%s248 + $0x70] sm:$0xff]
        %v318 = vld [vmem:[%s248 + $0x78] sm:$0xff]
        %v319 = vld [vmem:[%s248 + $0x80] sm:$0xff]
        %v320 = vld [vmem:[%s248 + $0x88] sm:$0xff]
        %v321 = vld [vmem:[%s248 + $0x90] sm:$0xff]
        %v322 = vld [vmem:[%s248 + $0x98] sm:$0xff]
        %v323 = vld [vmem:[%s248 + $0xa0] sm:$0xff]
        %v324 = vld [vmem:[%s248 + $0xa8] sm:$0xff]
        %v325 = vld [vmem:[%s248 + $0xb0] sm:$0xff]
        %v326 = vld [vmem:[%s248 + $0xb8] sm:$0xff]
        %v327 = vld [vmem:[%s248 + $0xc0] sm:$0xff]
        %v328 = vld [vmem:[%s248 + $0xc8] sm:$0xff]
        %v329 = vld [vmem:[%s248 + $0xd0] sm:$0xff]
        %v330 = vld [vmem:[%s248 + $0xd8] sm:$0xff]
        %v331 = vld [vmem:[%s248 + $0xe0] sm:$0xff]
        %v332 = vld [vmem:[%s248 + $0xe8] sm:$0xff]
        %v333 = vld [vmem:[%s248 + $0xf0] sm:$0xff]
        %v334 = vld [vmem:[%s248 + $0xf8] sm:$0xff]
        %v335 = vld [vmem:[%s248 + $0x100] sm:$0xff]
        %v336 = vld [vmem:[%s248 + $0x108] sm:$0xff]
        %v337 = vld [vmem:[%s248 + $0x110] sm:$0xff]
        %v338 = vld [vmem:[%s248 + $0x118] sm:$0xff]
        %v339 = vld [vmem:[%s248 + $0x120] sm:$0xff]
        %v340 = vld [vmem:[%s248 + $0x128] sm:$0xff]
        %v341 = vld [vmem:[%s248 + $0x130] sm:$0xff]
        %v342 = vld [vmem:[%s248 + $0x138] sm:$0xff]
        %v343 = vld [vmem:[%s248 + $0x140] sm:$0xff]
        %v344 = vld [vmem:[%s248 + $0x148] sm:$0xff]
        %v345 = vld [vmem:[%s248 + $0x150] sm:$0xff]
        %v346 = vld [vmem:[%s248 + $0x158] sm:$0xff]
        %v347 = vld [vmem:[%s248 + $0x160] sm:$0xff]
        %v348 = vld [vmem:[%s248 + $0x168] sm:$0xff]
        %v349 = vld [vmem:[%s248 + $0x170] sm:$0xff]
        %v350 = vld [vmem:[%s248 + $0x178] sm:$0xff]
        %v351 = vld [vmem:[%s248 + $0x180] sm:$0xff]
        %v352 = vld [vmem:[%s248 + $0x188] sm:$0xff]
        %v353 = vld [vmem:[%s248 + $0x190] sm:$0xff]
        %v354 = vld [vmem:[%s248 + $0x198] sm:$0xff]
        %v355 = vld [vmem:[%s248 + $0x1a0] sm:$0xff]
        %v356 = vld [vmem:[%s248 + $0x1a8] sm:$0xff]
        %v357 = vld [vmem:[%s248 + $0x1b0] sm:$0xff]
        %v358 = vld [vmem:[%s248 + $0x1b8] sm:$0xff]
        %v359 = vld [vmem:[%s248 + $0x1c0] sm:$0xff]
        %v360 = vld [vmem:[%s248 + $0x1c8] sm:$0xff]
        %v361 = vld [vmem:[%s248 + $0x1d0] sm:$0xff]
        %v362 = vld [vmem:[%s248 + $0x1d8] sm:$0xff]
        %v363 = vld [vmem:[%s248 + $0x1e0] sm:$0xff]
        %v364 = vld [vmem:[%s248 + $0x1e8] sm:$0xff]
        %v365 = vld [vmem:[%s248 + $0x1f0] sm:$0xff]
        %v366 = vld [vmem:[%s248 + $0x1f8] sm:$0xff]
        %v367 = vld [vmem:[%s248 + $0x200] sm:$0xff]
        %v368 = vld [vmem:[%s248 + $0x208] sm:$0xff]
        %v369 = vld [vmem:[%s248 + $0x210] sm:$0xff]
        %v370 = vld [vmem:[%s248 + $0x218] sm:$0xff]
        %v371 = vld [vmem:[%s248 + $0x220] sm:$0xff]
        %v372 = vld [vmem:[%s248 + $0x228] sm:$0xff]
        %v373 = vld [vmem:[%s248 + $0x230] sm:$0xff]
        %v374 = vld [vmem:[%s248 + $0x238] sm:$0xff]
        %v375 = vld [vmem:[%s248 + $0x240] sm:$0xff]
        %v376 = vld [vmem:[%s248 + $0x248] sm:$0xff]
        %v377 = vld [vmem:[%s248 + $0x250] sm:$0xff]
        %v378 = vld [vmem:[%s248 + $0x258] sm:$0xff]
        %v379 = vld [vmem:[%s248 + $0x260] sm:$0xff]
        %v380 = vld [vmem:[%s248 + $0x268] sm:$0xff]
        %v381 = vld [vmem:[%s248 + $0x270] sm:$0xff]
        %v382 = vld [vmem:[%s248 + $0x278] sm:$0xff]
        %v383 = vld [vmem:[%s248 + $0x280] sm:$0xff]
        %v384 = vld [vmem:[%s248 + $0x288] sm:$0xff]
        %v385 = vld [vmem:[%s248 + $0x290] sm:$0xff]
        %v386 = vld [vmem:[%s248 + $0x298] sm:$0xff]
        %v387 = vld [vmem:[%s248 + $0x2a0] sm:$0xff]
        %v388 = vld [vmem:[%s248 + $0x2a8] sm:$0xff]
        %v389 = vld [vmem:[%s248 + $0x2b0] sm:$0xff]
        %v390 = vld [vmem:[%s248 + $0x2b8] sm:$0xff]
        %v391 = vld [vmem:[%s248 + $0x2c0] sm:$0xff]
        %v392 = vld [vmem:[%s248 + $0x2c8] sm:$0xff]
        %v393 = vld [vmem:[%s248 + $0x2d0] sm:$0xff]
        %v394 = vld [vmem:[%s248 + $0x2d8] sm:$0xff]
        %v395 = vld [vmem:[%s248 + $0x2e0] sm:$0xff]
        %v396 = vld [vmem:[%s248 + $0x2e8] sm:$0xff]
        %v397 = vld [vmem:[%s248 + $0x2f0] sm:$0xff]
        %v398 = vld [vmem:[%s248 + $0x2f8] sm:$0xff]
        %v399 = vld [vmem:[%s248 + $0x300] sm:$0xff]
        %v400 = vld [vmem:[%s248 + $0x308] sm:$0xff]
        %v401 = vld [vmem:[%s248 + $0x310] sm:$0xff]
        %v402 = vld [vmem:[%s248 + $0x318] sm:$0xff]
        %v403 = vld [vmem:[%s248 + $0x320] sm:$0xff]
        %v404 = vld [vmem:[%s248 + $0x328] sm:$0xff]
        %v405 = vld [vmem:[%s248 + $0x330] sm:$0xff]
        %v406 = vld [vmem:[%s248 + $0x338] sm:$0xff]
        %v407 = vld [vmem:[%s248 + $0x340] sm:$0xff]
        %v408 = vld [vmem:[%s248 + $0x348] sm:$0xff]
        %v409 = vld [vmem:[%s248 + $0x350] sm:$0xff]
        %v410 = vld [vmem:[%s248 + $0x358] sm:$0xff]
        %v411 = vld [vmem:[%s248 + $0x360] sm:$0xff]
        %v412 = vld [vmem:[%s248 + $0x368] sm:$0xff]
        %v413 = vld [vmem:[%s248 + $0x370] sm:$0xff]
        %v414 = vld [vmem:[%s248 + $0x378] sm:$0xff]
        %v415 = vld [vmem:[%s248 + $0x380] sm:$0xff]
        %v416 = vld [vmem:[%s248 + $0x388] sm:$0xff]
        %v417 = vld [vmem:[%s248 + $0x390] sm:$0xff]
        %v418 = vld [vmem:[%s248 + $0x398] sm:$0xff]
        %v419 = vld [vmem:[%s248 + $0x3a0] sm:$0xff]
        %v420 = vld [vmem:[%s248 + $0x3a8] sm:$0xff]
        %v421 = vld [vmem:[%s248 + $0x3b0] sm:$0xff]
        %v422 = vld [vmem:[%s248 + $0x3b8] sm:$0xff]
        %v423 = vld [vmem:[%s248 + $0x3c0] sm:$0xff]
        %v424 = vld [vmem:[%s248 + $0x3c8] sm:$0xff]
        %v425 = vld [vmem:[%s248 + $0x3d0] sm:$0xff]
        %v426 = vld [vmem:[%s248 + $0x3d8] sm:$0xff]
        %v427 = vld [vmem:[%s248 + $0x3e0] sm:$0xff]
        %v428 = vld [vmem:[%s248 + $0x3e8] sm:$0xff]
        %v429 = vld [vmem:[%s248 + $0x3f0] sm:$0xff]
        %v430 = vld [vmem:[%s248 + $0x3f8] sm:$0xff]
        %v431 = vld [vmem:[%s257] sm:$0xff]
        %v432 = vld [vmem:[%s2] sm:$0x1]
        %v434 = vlaneseq
        %v435 = vshrl.u32 %v434, 7
        %v436 = vsub.s32 0, %v435
        %v437 = vrot.slane %v432, %v436
        %v439 = vmul.f32 %v303, %v437
        %v440 = vmul.f32 %v304, %v437
        %v441 = vmul.f32 %v305, %v437
        %v442 = vmul.f32 %v306, %v437
        %v443 = vmul.f32 %v307, %v437
        %v444 = vmul.f32 %v308, %v437
        %v445 = vmul.f32 %v309, %v437
        %v446 = vmul.f32 %v310, %v437
        %v447 = vmul.f32 %v311, %v437
        %v448 = vmul.f32 %v312, %v437
        %v449 = vmul.f32 %v313, %v437
        %v450 = vmul.f32 %v314, %v437
        %v451 = vmul.f32 %v315, %v437
        %v452 = vmul.f32 %v316, %v437
        %v453 = vmul.f32 %v317, %v437
        %v454 = vmul.f32 %v318, %v437
        %v455 = vmul.f32 %v319, %v437
        %v456 = vmul.f32 %v320, %v437
        %v457 = vmul.f32 %v321, %v437
        %v458 = vmul.f32 %v322, %v437
        %v459 = vmul.f32 %v323, %v437
        %v460 = vmul.f32 %v324, %v437
        %v461 = vmul.f32 %v325, %v437
        %v462 = vmul.f32 %v326, %v437
        %v463 = vmul.f32 %v327, %v437
        %v464 = vmul.f32 %v328, %v437
        %v465 = vmul.f32 %v329, %v437
        %v466 = vmul.f32 %v330, %v437
        %v467 = vmul.f32 %v331, %v437
        %v468 = vmul.f32 %v332, %v437
        %v469 = vmul.f32 %v333, %v437
        %v470 = vmul.f32 %v334, %v437
        %v471 = vmul.f32 %v335, %v437
        %v472 = vmul.f32 %v336, %v437
        %v473 = vmul.f32 %v337, %v437
        %v474 = vmul.f32 %v338, %v437
        %v475 = vmul.f32 %v339, %v437
        %v476 = vmul.f32 %v340, %v437
        %v477 = vmul.f32 %v341, %v437
        %v478 = vmul.f32 %v342, %v437
        %v479 = vmul.f32 %v343, %v437
        %v480 = vmul.f32 %v344, %v437
        %v481 = vmul.f32 %v345, %v437
        %v482 = vmul.f32 %v346, %v437
        %v483 = vmul.f32 %v347, %v437
        %v484 = vmul.f32 %v348, %v437
        %v485 = vmul.f32 %v349, %v437
        %v486 = vmul.f32 %v350, %v437
        %v487 = vmul.f32 %v351, %v437
        %v488 = vmul.f32 %v352, %v437
        %v489 = vmul.f32 %v353, %v437
        %v490 = vmul.f32 %v354, %v437
        %v491 = vmul.f32 %v355, %v437
        %v492 = vmul.f32 %v356, %v437
        %v493 = vmul.f32 %v357, %v437
        %v494 = vmul.f32 %v358, %v437
        %v495 = vmul.f32 %v359, %v437
        %v496 = vmul.f32 %v360, %v437
        %v497 = vmul.f32 %v361, %v437
        %v498 = vmul.f32 %v362, %v437
        %v499 = vmul.f32 %v363, %v437
        %v500 = vmul.f32 %v364, %v437
        %v501 = vmul.f32 %v365, %v437
        %v502 = vmul.f32 %v366, %v437
        %v503 = vmul.f32 %v367, %v437
        %v504 = vmul.f32 %v368, %v437
        %v505 = vmul.f32 %v369, %v437
        %v506 = vmul.f32 %v370, %v437
        %v507 = vmul.f32 %v371, %v437
        %v508 = vmul.f32 %v372, %v437
        %v509 = vmul.f32 %v373, %v437
        %v510 = vmul.f32 %v374, %v437
        %v511 = vmul.f32 %v375, %v437
        %v512 = vmul.f32 %v376, %v437
        %v513 = vmul.f32 %v377, %v437
        %v514 = vmul.f32 %v378, %v437
        %v515 = vmul.f32 %v379, %v437
        %v516 = vmul.f32 %v380, %v437
        %v517 = vmul.f32 %v381, %v437
        %v518 = vmul.f32 %v382, %v437
        %v519 = vmul.f32 %v383, %v437
        %v520 = vmul.f32 %v384, %v437
        %v521 = vmul.f32 %v385, %v437
        %v522 = vmul.f32 %v386, %v437
        %v523 = vmul.f32 %v387, %v437
        %v524 = vmul.f32 %v388, %v437
        %v525 = vmul.f32 %v389, %v437
        %v526 = vmul.f32 %v390, %v437
        %v527 = vmul.f32 %v391, %v437
        %v528 = vmul.f32 %v392, %v437
        %v529 = vmul.f32 %v393, %v437
        %v530 = vmul.f32 %v394, %v437
        %v531 = vmul.f32 %v395, %v437
        %v532 = vmul.f32 %v396, %v437
        %v533 = vmul.f32 %v397, %v437
        %v534 = vmul.f32 %v398, %v437
        %v535 = vmul.f32 %v399, %v437
        %v536 = vmul.f32 %v400, %v437
        %v537 = vmul.f32 %v401, %v437
        %v538 = vmul.f32 %v402, %v437
        %v539 = vmul.f32 %v403, %v437
        %v540 = vmul.f32 %v404, %v437
        %v541 = vmul.f32 %v405, %v437
        %v542 = vmul.f32 %v406, %v437
        %v543 = vmul.f32 %v407, %v437
        %v544 = vmul.f32 %v408, %v437
        %v545 = vmul.f32 %v409, %v437
        %v546 = vmul.f32 %v410, %v437
        %v547 = vmul.f32 %v411, %v437
        %v548 = vmul.f32 %v412, %v437
        %v549 = vmul.f32 %v413, %v437
        %v550 = vmul.f32 %v414, %v437
        %v551 = vmul.f32 %v415, %v437
        %v552 = vmul.f32 %v416, %v437
        %v553 = vmul.f32 %v417, %v437
        %v554 = vmul.f32 %v418, %v437
        %v555 = vmul.f32 %v419, %v437
        %v556 = vmul.f32 %v420, %v437
        %v557 = vmul.f32 %v421, %v437
        %v558 = vmul.f32 %v422, %v437
        %v559 = vmul.f32 %v423, %v437
        %v560 = vmul.f32 %v424, %v437
        %v561 = vmul.f32 %v425, %v437
        %v562 = vmul.f32 %v426, %v437
        %v563 = vmul.f32 %v427, %v437
        %v564 = vmul.f32 %v428, %v437
        %v565 = vmul.f32 %v429, %v437
        %v566 = vmul.f32 %v430, %v437
        %567 = vadd.xlane.f32.xlu0 %v439
        %v568 = vpop.xlane.xlu0 %567
        %569 = vadd.xlane.f32.xlu0 %v440
        %v570 = vpop.xlane.xlu0 %569
        %571 = vadd.xlane.f32.xlu0 %v441
        %v572 = vpop.xlane.xlu0 %571
        %573 = vadd.xlane.f32.xlu0 %v442
        %v574 = vpop.xlane.xlu0 %573
        %575 = vadd.xlane.f32.xlu0 %v443
        %v576 = vpop.xlane.xlu0 %575
        %577 = vadd.xlane.f32.xlu0 %v444
        %v578 = vpop.xlane.xlu0 %577
        %579 = vadd.xlane.f32.xlu0 %v445
        %v580 = vpop.xlane.xlu0 %579
        %581 = vadd.xlane.f32.xlu0 %v446
        %v582 = vpop.xlane.xlu0 %581
        %583 = vadd.xlane.f32.xlu0 %v447
        %v584 = vpop.xlane.xlu0 %583
        %585 = vadd.xlane.f32.xlu0 %v448
        %v586 = vpop.xlane.xlu0 %585
        %587 = vadd.xlane.f32.xlu0 %v449
        %v588 = vpop.xlane.xlu0 %587
        %589 = vadd.xlane.f32.xlu0 %v450
        %v590 = vpop.xlane.xlu0 %589
        %591 = vadd.xlane.f32.xlu0 %v451
        %v592 = vpop.xlane.xlu0 %591
        %593 = vadd.xlane.f32.xlu0 %v452
        %v594 = vpop.xlane.xlu0 %593
        %595 = vadd.xlane.f32.xlu0 %v453
        %v596 = vpop.xlane.xlu0 %595
        %597 = vadd.xlane.f32.xlu0 %v454
        %v598 = vpop.xlane.xlu0 %597
        %599 = vadd.xlane.f32.xlu0 %v455
        %v600 = vpop.xlane.xlu0 %599
        %601 = vadd.xlane.f32.xlu0 %v456
        %v602 = vpop.xlane.xlu0 %601
        %603 = vadd.xlane.f32.xlu0 %v457
        %v604 = vpop.xlane.xlu0 %603
        %605 = vadd.xlane.f32.xlu0 %v458
        %v606 = vpop.xlane.xlu0 %605
        %607 = vadd.xlane.f32.xlu0 %v459
        %v608 = vpop.xlane.xlu0 %607
        %609 = vadd.xlane.f32.xlu0 %v460
        %v610 = vpop.xlane.xlu0 %609
        %611 = vadd.xlane.f32.xlu0 %v461
        %v612 = vpop.xlane.xlu0 %611
        %613 = vadd.xlane.f32.xlu0 %v462
        %v614 = vpop.xlane.xlu0 %613
        %615 = vadd.xlane.f32.xlu0 %v463
        %v616 = vpop.xlane.xlu0 %615
        %617 = vadd.xlane.f32.xlu0 %v464
        %v618 = vpop.xlane.xlu0 %617
        %619 = vadd.xlane.f32.xlu0 %v465
        %v620 = vpop.xlane.xlu0 %619
        %621 = vadd.xlane.f32.xlu0 %v466
        %v622 = vpop.xlane.xlu0 %621
        %623 = vadd.xlane.f32.xlu0 %v467
        %v624 = vpop.xlane.xlu0 %623
        %625 = vadd.xlane.f32.xlu0 %v468
        %v626 = vpop.xlane.xlu0 %625
        %627 = vadd.xlane.f32.xlu0 %v469
        %v628 = vpop.xlane.xlu0 %627
        %629 = vadd.xlane.f32.xlu0 %v470
        %v630 = vpop.xlane.xlu0 %629
        %631 = vadd.xlane.f32.xlu0 %v471
        %v632 = vpop.xlane.xlu0 %631
        %633 = vadd.xlane.f32.xlu0 %v472
        %v634 = vpop.xlane.xlu0 %633
        %635 = vadd.xlane.f32.xlu0 %v473
        %v636 = vpop.xlane.xlu0 %635
        %637 = vadd.xlane.f32.xlu0 %v474
        %v638 = vpop.xlane.xlu0 %637
        %639 = vadd.xlane.f32.xlu0 %v475
        %v640 = vpop.xlane.xlu0 %639
        %641 = vadd.xlane.f32.xlu0 %v476
        %v642 = vpop.xlane.xlu0 %641
        %643 = vadd.xlane.f32.xlu0 %v477
        %v644 = vpop.xlane.xlu0 %643
        %645 = vadd.xlane.f32.xlu0 %v478
        %v646 = vpop.xlane.xlu0 %645
        %647 = vadd.xlane.f32.xlu0 %v479
        %v648 = vpop.xlane.xlu0 %647
        %649 = vadd.xlane.f32.xlu0 %v480
        %v650 = vpop.xlane.xlu0 %649
        %651 = vadd.xlane.f32.xlu0 %v481
        %v652 = vpop.xlane.xlu0 %651
        %653 = vadd.xlane.f32.xlu0 %v482
        %v654 = vpop.xlane.xlu0 %653
        %655 = vadd.xlane.f32.xlu0 %v483
        %v656 = vpop.xlane.xlu0 %655
        %657 = vadd.xlane.f32.xlu0 %v484
        %v658 = vpop.xlane.xlu0 %657
        %659 = vadd.xlane.f32.xlu0 %v485
        %v660 = vpop.xlane.xlu0 %659
        %661 = vadd.xlane.f32.xlu0 %v486
        %v662 = vpop.xlane.xlu0 %661
        %663 = vadd.xlane.f32.xlu0 %v487
        %v664 = vpop.xlane.xlu0 %663
        %665 = vadd.xlane.f32.xlu0 %v488
        %v666 = vpop.xlane.xlu0 %665
        %667 = vadd.xlane.f32.xlu0 %v489
        %v668 = vpop.xlane.xlu0 %667
        %669 = vadd.xlane.f32.xlu0 %v490
        %v670 = vpop.xlane.xlu0 %669
        %671 = vadd.xlane.f32.xlu0 %v491
        %v672 = vpop.xlane.xlu0 %671
        %673 = vadd.xlane.f32.xlu0 %v492
        %v674 = vpop.xlane.xlu0 %673
        %675 = vadd.xlane.f32.xlu0 %v493
        %v676 = vpop.xlane.xlu0 %675
        %677 = vadd.xlane.f32.xlu0 %v494
        %v678 = vpop.xlane.xlu0 %677
        %679 = vadd.xlane.f32.xlu0 %v495
        %v680 = vpop.xlane.xlu0 %679
        %681 = vadd.xlane.f32.xlu0 %v496
        %v682 = vpop.xlane.xlu0 %681
        %683 = vadd.xlane.f32.xlu0 %v497
        %v684 = vpop.xlane.xlu0 %683
        %685 = vadd.xlane.f32.xlu0 %v498
        %v686 = vpop.xlane.xlu0 %685
        %687 = vadd.xlane.f32.xlu0 %v499
        %v688 = vpop.xlane.xlu0 %687
        %689 = vadd.xlane.f32.xlu0 %v500
        %v690 = vpop.xlane.xlu0 %689
        %691 = vadd.xlane.f32.xlu0 %v501
        %v692 = vpop.xlane.xlu0 %691
        %693 = vadd.xlane.f32.xlu0 %v502
        %v694 = vpop.xlane.xlu0 %693
        %695 = vadd.xlane.f32.xlu0 %v503
        %v696 = vpop.xlane.xlu0 %695
        %697 = vadd.xlane.f32.xlu0 %v504
        %v698 = vpop.xlane.xlu0 %697
        %699 = vadd.xlane.f32.xlu0 %v505
        %v700 = vpop.xlane.xlu0 %699
        %701 = vadd.xlane.f32.xlu0 %v506
        %v702 = vpop.xlane.xlu0 %701
        %703 = vadd.xlane.f32.xlu0 %v507
        %v704 = vpop.xlane.xlu0 %703
        %705 = vadd.xlane.f32.xlu0 %v508
        %v706 = vpop.xlane.xlu0 %705
        %707 = vadd.xlane.f32.xlu0 %v509
        %v708 = vpop.xlane.xlu0 %707
        %709 = vadd.xlane.f32.xlu0 %v510
        %v710 = vpop.xlane.xlu0 %709
        %711 = vadd.xlane.f32.xlu0 %v511
        %v712 = vpop.xlane.xlu0 %711
        %713 = vadd.xlane.f32.xlu0 %v512
        %v714 = vpop.xlane.xlu0 %713
        %715 = vadd.xlane.f32.xlu0 %v513
        %v716 = vpop.xlane.xlu0 %715
        %717 = vadd.xlane.f32.xlu0 %v514
        %v718 = vpop.xlane.xlu0 %717
        %719 = vadd.xlane.f32.xlu0 %v515
        %v720 = vpop.xlane.xlu0 %719
        %721 = vadd.xlane.f32.xlu0 %v516
        %v722 = vpop.xlane.xlu0 %721
        %723 = vadd.xlane.f32.xlu0 %v517
        %v724 = vpop.xlane.xlu0 %723
        %725 = vadd.xlane.f32.xlu0 %v518
        %v726 = vpop.xlane.xlu0 %725
        %727 = vadd.xlane.f32.xlu0 %v519
        %v728 = vpop.xlane.xlu0 %727
        %729 = vadd.xlane.f32.xlu0 %v520
        %v730 = vpop.xlane.xlu0 %729
        %731 = vadd.xlane.f32.xlu0 %v521
        %v732 = vpop.xlane.xlu0 %731
        %733 = vadd.xlane.f32.xlu0 %v522
        %v734 = vpop.xlane.xlu0 %733
        %735 = vadd.xlane.f32.xlu0 %v523
        %v736 = vpop.xlane.xlu0 %735
        %737 = vadd.xlane.f32.xlu0 %v524
        %v738 = vpop.xlane.xlu0 %737
        %739 = vadd.xlane.f32.xlu0 %v525
        %v740 = vpop.xlane.xlu0 %739
        %741 = vadd.xlane.f32.xlu0 %v526
        %v742 = vpop.xlane.xlu0 %741
        %743 = vadd.xlane.f32.xlu0 %v527
        %v744 = vpop.xlane.xlu0 %743
        %745 = vadd.xlane.f32.xlu0 %v528
        %v746 = vpop.xlane.xlu0 %745
        %747 = vadd.xlane.f32.xlu0 %v529
        %v748 = vpop.xlane.xlu0 %747
        %749 = vadd.xlane.f32.xlu0 %v530
        %v750 = vpop.xlane.xlu0 %749
        %751 = vadd.xlane.f32.xlu0 %v531
        %v752 = vpop.xlane.xlu0 %751
        %753 = vadd.xlane.f32.xlu0 %v532
        %v754 = vpop.xlane.xlu0 %753
        %755 = vadd.xlane.f32.xlu0 %v533
        %v756 = vpop.xlane.xlu0 %755
        %757 = vadd.xlane.f32.xlu0 %v534
        %v758 = vpop.xlane.xlu0 %757
        %759 = vadd.xlane.f32.xlu0 %v535
        %v760 = vpop.xlane.xlu0 %759
        %761 = vadd.xlane.f32.xlu0 %v536
        %v762 = vpop.xlane.xlu0 %761
        %763 = vadd.xlane.f32.xlu0 %v537
        %v764 = vpop.xlane.xlu0 %763
        %765 = vadd.xlane.f32.xlu0 %v538
        %v766 = vpop.xlane.xlu0 %765
        %767 = vadd.xlane.f32.xlu0 %v539
        %v768 = vpop.xlane.xlu0 %767
        %769 = vadd.xlane.f32.xlu0 %v540
        %v770 = vpop.xlane.xlu0 %769
        %771 = vadd.xlane.f32.xlu0 %v541
        %v772 = vpop.xlane.xlu0 %771
        %773 = vadd.xlane.f32.xlu0 %v542
        %v774 = vpop.xlane.xlu0 %773
        %775 = vadd.xlane.f32.xlu0 %v543
        %v776 = vpop.xlane.xlu0 %775
        %777 = vadd.xlane.f32.xlu0 %v544
        %v778 = vpop.xlane.xlu0 %777
        %779 = vadd.xlane.f32.xlu0 %v545
        %v780 = vpop.xlane.xlu0 %779
        %781 = vadd.xlane.f32.xlu0 %v546
        %v782 = vpop.xlane.xlu0 %781
        %783 = vadd.xlane.f32.xlu0 %v547
        %v784 = vpop.xlane.xlu0 %783
        %785 = vadd.xlane.f32.xlu0 %v548
        %v786 = vpop.xlane.xlu0 %785
        %787 = vadd.xlane.f32.xlu0 %v549
        %v788 = vpop.xlane.xlu0 %787
        %789 = vadd.xlane.f32.xlu0 %v550
        %v790 = vpop.xlane.xlu0 %789
        %791 = vadd.xlane.f32.xlu0 %v551
        %v792 = vpop.xlane.xlu0 %791
        %793 = vadd.xlane.f32.xlu0 %v552
        %v794 = vpop.xlane.xlu0 %793
        %795 = vadd.xlane.f32.xlu0 %v553
        %v796 = vpop.xlane.xlu0 %795
        %797 = vadd.xlane.f32.xlu0 %v554
        %v798 = vpop.xlane.xlu0 %797
        %799 = vadd.xlane.f32.xlu0 %v555
        %v800 = vpop.xlane.xlu0 %799
        %801 = vadd.xlane.f32.xlu0 %v556
        %v802 = vpop.xlane.xlu0 %801
        %803 = vadd.xlane.f32.xlu0 %v557
        %v804 = vpop.xlane.xlu0 %803
        %805 = vadd.xlane.f32.xlu0 %v558
        %v806 = vpop.xlane.xlu0 %805
        %807 = vadd.xlane.f32.xlu0 %v559
        %v808 = vpop.xlane.xlu0 %807
        %809 = vadd.xlane.f32.xlu0 %v560
        %v810 = vpop.xlane.xlu0 %809
        %811 = vadd.xlane.f32.xlu0 %v561
        %v812 = vpop.xlane.xlu0 %811
        %813 = vadd.xlane.f32.xlu0 %v562
        %v814 = vpop.xlane.xlu0 %813
        %815 = vadd.xlane.f32.xlu0 %v563
        %v816 = vpop.xlane.xlu0 %815
        %817 = vadd.xlane.f32.xlu0 %v564
        %v818 = vpop.xlane.xlu0 %817
        %819 = vadd.xlane.f32.xlu0 %v565
        %v820 = vpop.xlane.xlu0 %819
        %821 = vadd.xlane.f32.xlu0 %v566
        %v822 = vpop.xlane.xlu0 %821
        %vm823 = vcmp.gt.f32.partialorder %v431, 0.5
        %v824 = vlaneseq
        %v825 = vand.u32 %v824, 127
        %vm826 = vcmp.lt.s32.totalorder %v825, 8
        %v827 = vsel %vm826, -1e+32, -3.4028235e+38
        %v956 = vlaneseq
        %v957 = vshrl.u32 %v956, 7
        %v958 = vsub.s32 %v825, %v957
        %v959 = vrot.slane %v568, %v958
        %v960 = vadd.s32 %v825, 4294967288
        %v961 = vlaneseq
        %v962 = vshrl.u32 %v961, 7
        %v963 = vsub.s32 %v960, %v962
        %v964 = vrot.slane %v570, %v963
        %vm965 = vcmask 130112
        %v966 = vsel %vm965, %v964, %v959
        %v967 = vadd.s32 %v825, 4294967280
        %v968 = vlaneseq
        %v969 = vshrl.u32 %v968, 7
        %v970 = vsub.s32 %v967, %v969
        %v971 = vrot.slane %v572, %v970
        %vm972 = vcmask 195712
        %v973 = vsel %vm972, %v971, %v966
        %v974 = vadd.s32 %v825, 4294967272
        %v975 = vlaneseq
        %v976 = vshrl.u32 %v975, 7
        %v977 = vsub.s32 %v974, %v976
        %v978 = vrot.slane %v574, %v977
        %vm979 = vcmask 261312
        %v980 = vsel %vm979, %v978, %v973
        %v981 = vadd.s32 %v825, 4294967264
        %v982 = vlaneseq
        %v983 = vshrl.u32 %v982, 7
        %v984 = vsub.s32 %v981, %v983
        %v985 = vrot.slane %v576, %v984
        %vm986 = vcmask 326912
        %v987 = vsel %vm986, %v985, %v980
        %v988 = vadd.s32 %v825, 4294967256
        %v989 = vlaneseq
        %v990 = vshrl.u32 %v989, 7
        %v991 = vsub.s32 %v988, %v990
        %v992 = vrot.slane %v578, %v991
        %vm993 = vcmask 392512
        %v994 = vsel %vm993, %v992, %v987
        %v995 = vadd.s32 %v825, 4294967248
        %v996 = vlaneseq
        %v997 = vshrl.u32 %v996, 7
        %v998 = vsub.s32 %v995, %v997
        %v999 = vrot.slane %v580, %v998
        %vm1000 = vcmask 458112
        %v1001 = vsel %vm1000, %v999, %v994
        %v1002 = vadd.s32 %v825, 4294967240
        %v1003 = vlaneseq
        %v1004 = vshrl.u32 %v1003, 7
        %v1005 = vsub.s32 %v1002, %v1004
        %v1006 = vrot.slane %v582, %v1005
        %vm1007 = vcmask 523712
        %v1008 = vsel %vm1007, %v1006, %v1001
        %v1009 = vadd.s32 %v825, 4294967232
        %v1010 = vlaneseq
        %v1011 = vshrl.u32 %v1010, 7
        %v1012 = vsub.s32 %v1009, %v1011
        %v1013 = vrot.slane %v584, %v1012
        %vm1014 = vcmask 589312
        %v1015 = vsel %vm1014, %v1013, %v1008
        %v1016 = vadd.s32 %v825, 4294967224
        %v1017 = vlaneseq
        %v1018 = vshrl.u32 %v1017, 7
        %v1019 = vsub.s32 %v1016, %v1018
        %v1020 = vrot.slane %v586, %v1019
        %vm1021 = vcmask 654912
        %v1022 = vsel %vm1021, %v1020, %v1015
        %v1023 = vadd.s32 %v825, 4294967216
        %v1024 = vlaneseq
        %v1025 = vshrl.u32 %v1024, 7
        %v1026 = vsub.s32 %v1023, %v1025
        %v1027 = vrot.slane %v588, %v1026
        %vm1028 = vcmask 720512
        %v1029 = vsel %vm1028, %v1027, %v1022
        %v1030 = vadd.s32 %v825, 4294967208
        %v1031 = vlaneseq
        %v1032 = vshrl.u32 %v1031, 7
        %v1033 = vsub.s32 %v1030, %v1032
        %v1034 = vrot.slane %v590, %v1033
        %vm1035 = vcmask 786112
        %v1036 = vsel %vm1035, %v1034, %v1029
        %v1037 = vadd.s32 %v825, 4294967200
        %v1038 = vlaneseq
        %v1039 = vshrl.u32 %v1038, 7
        %v1040 = vsub.s32 %v1037, %v1039
        %v1041 = vrot.slane %v592, %v1040
        %vm1042 = vcmask 851712
        %v1043 = vsel %vm1042, %v1041, %v1036
        %v1044 = vadd.s32 %v825, 4294967192
        %v1045 = vlaneseq
        %v1046 = vshrl.u32 %v1045, 7
        %v1047 = vsub.s32 %v1044, %v1046
        %v1048 = vrot.slane %v594, %v1047
        %vm1049 = vcmask 917312
        %v1050 = vsel %vm1049, %v1048, %v1043
        %v1051 = vadd.s32 %v825, 4294967184
        %v1052 = vlaneseq
        %v1053 = vshrl.u32 %v1052, 7
        %v1054 = vsub.s32 %v1051, %v1053
        %v1055 = vrot.slane %v596, %v1054
        %vm1056 = vcmask 982912
        %v1057 = vsel %vm1056, %v1055, %v1050
        %v1058 = vadd.s32 %v825, 4294967176
        %v1059 = vlaneseq
        %v1060 = vshrl.u32 %v1059, 7
        %v1061 = vsub.s32 %v1058, %v1060
        %v1062 = vrot.slane %v598, %v1061
        %vm1063 = vcmask 1048512
        %v1064 = vsel %vm1063, %v1062, %v1057
        %v1065 = vlaneseq
        %v1066 = vshrl.u32 %v1065, 7
        %v1067 = vsub.s32 %v825, %v1066
        %v1068 = vrot.slane %v600, %v1067
        %v1069 = vlaneseq
        %v1070 = vshrl.u32 %v1069, 7
        %v1071 = vsub.s32 %v960, %v1070
        %v1072 = vrot.slane %v602, %v1071
        %v1073 = vsel %vm965, %v1072, %v1068
        %v1074 = vlaneseq
        %v1075 = vshrl.u32 %v1074, 7
        %v1076 = vsub.s32 %v967, %v1075
        %v1077 = vrot.slane %v604, %v1076
        %v1078 = vsel %vm972, %v1077, %v1073
        %v1079 = vlaneseq
        %v1080 = vshrl.u32 %v1079, 7
        %v1081 = vsub.s32 %v974, %v1080
        %v1082 = vrot.slane %v606, %v1081
        %v1083 = vsel %vm979, %v1082, %v1078
        %v1084 = vlaneseq
        %v1085 = vshrl.u32 %v1084, 7
        %v1086 = vsub.s32 %v981, %v1085
        %v1087 = vrot.slane %v608, %v1086
        %v1088 = vsel %vm986, %v1087, %v1083
        %v1089 = vlaneseq
        %v1090 = vshrl.u32 %v1089, 7
        %v1091 = vsub.s32 %v988, %v1090
        %v1092 = vrot.slane %v610, %v1091
        %v1093 = vsel %vm993, %v1092, %v1088
        %v1094 = vlaneseq
        %v1095 = vshrl.u32 %v1094, 7
        %v1096 = vsub.s32 %v995, %v1095
        %v1097 = vrot.slane %v612, %v1096
        %v1098 = vsel %vm1000, %v1097, %v1093
        %v1099 = vlaneseq
        %v1100 = vshrl.u32 %v1099, 7
        %v1101 = vsub.s32 %v1002, %v1100
        %v1102 = vrot.slane %v614, %v1101
        %v1103 = vsel %vm1007, %v1102, %v1098
        %v1104 = vlaneseq
        %v1105 = vshrl.u32 %v1104, 7
        %v1106 = vsub.s32 %v1009, %v1105
        %v1107 = vrot.slane %v616, %v1106
        %v1108 = vsel %vm1014, %v1107, %v1103
        %v1109 = vlaneseq
        %v1110 = vshrl.u32 %v1109, 7
        %v1111 = vsub.s32 %v1016, %v1110
        %v1112 = vrot.slane %v618, %v1111
        %v1113 = vsel %vm1021, %v1112, %v1108
        %v1114 = vlaneseq
        %v1115 = vshrl.u32 %v1114, 7
        %v1116 = vsub.s32 %v1023, %v1115
        %v1117 = vrot.slane %v620, %v1116
        %v1118 = vsel %vm1028, %v1117, %v1113
        %v1119 = vlaneseq
        %v1120 = vshrl.u32 %v1119, 7
        %v1121 = vsub.s32 %v1030, %v1120
        %v1122 = vrot.slane %v622, %v1121
        %v1123 = vsel %vm1035, %v1122, %v1118
        %v1124 = vlaneseq
        %v1125 = vshrl.u32 %v1124, 7
        %v1126 = vsub.s32 %v1037, %v1125
        %v1127 = vrot.slane %v624, %v1126
        %v1128 = vsel %vm1042, %v1127, %v1123
        %v1129 = vlaneseq
        %v1130 = vshrl.u32 %v1129, 7
        %v1131 = vsub.s32 %v1044, %v1130
        %v1132 = vrot.slane %v626, %v1131
        %v1133 = vsel %vm1049, %v1132, %v1128
        %v1134 = vlaneseq
        %v1135 = vshrl.u32 %v1134, 7
        %v1136 = vsub.s32 %v1051, %v1135
        %v1137 = vrot.slane %v628, %v1136
        %v1138 = vsel %vm1056, %v1137, %v1133
        %v1139 = vlaneseq
        %v1140 = vshrl.u32 %v1139, 7
        %v1141 = vsub.s32 %v1058, %v1140
        %v1142 = vrot.slane %v630, %v1141
        %v1143 = vsel %vm1063, %v1142, %v1138
        %v1144 = vlaneseq
        %v1145 = vshrl.u32 %v1144, 7
        %v1146 = vsub.s32 %v825, %v1145
        %v1147 = vrot.slane %v632, %v1146
        %v1148 = vlaneseq
        %v1149 = vshrl.u32 %v1148, 7
        %v1150 = vsub.s32 %v960, %v1149
        %v1151 = vrot.slane %v634, %v1150
        %v1152 = vsel %vm965, %v1151, %v1147
        %v1153 = vlaneseq
        %v1154 = vshrl.u32 %v1153, 7
        %v1155 = vsub.s32 %v967, %v1154
        %v1156 = vrot.slane %v636, %v1155
        %v1157 = vsel %vm972, %v1156, %v1152
        %v1158 = vlaneseq
        %v1159 = vshrl.u32 %v1158, 7
        %v1160 = vsub.s32 %v974, %v1159
        %v1161 = vrot.slane %v638, %v1160
        %v1162 = vsel %vm979, %v1161, %v1157
        %v1163 = vlaneseq
        %v1164 = vshrl.u32 %v1163, 7
        %v1165 = vsub.s32 %v981, %v1164
        %v1166 = vrot.slane %v640, %v1165
        %v1167 = vsel %vm986, %v1166, %v1162
        %v1168 = vlaneseq
        %v1169 = vshrl.u32 %v1168, 7
        %v1170 = vsub.s32 %v988, %v1169
        %v1171 = vrot.slane %v642, %v1170
        %v1172 = vsel %vm993, %v1171, %v1167
        %v1173 = vlaneseq
        %v1174 = vshrl.u32 %v1173, 7
        %v1175 = vsub.s32 %v995, %v1174
        %v1176 = vrot.slane %v644, %v1175
        %v1177 = vsel %vm1000, %v1176, %v1172
        %v1178 = vlaneseq
        %v1179 = vshrl.u32 %v1178, 7
        %v1180 = vsub.s32 %v1002, %v1179
        %v1181 = vrot.slane %v646, %v1180
        %v1182 = vsel %vm1007, %v1181, %v1177
        %v1183 = vlaneseq
        %v1184 = vshrl.u32 %v1183, 7
        %v1185 = vsub.s32 %v1009, %v1184
        %v1186 = vrot.slane %v648, %v1185
        %v1187 = vsel %vm1014, %v1186, %v1182
        %v1188 = vlaneseq
        %v1189 = vshrl.u32 %v1188, 7
        %v1190 = vsub.s32 %v1016, %v1189
        %v1191 = vrot.slane %v650, %v1190
        %v1192 = vsel %vm1021, %v1191, %v1187
        %v1193 = vlaneseq
        %v1194 = vshrl.u32 %v1193, 7
        %v1195 = vsub.s32 %v1023, %v1194
        %v1196 = vrot.slane %v652, %v1195
        %v1197 = vsel %vm1028, %v1196, %v1192
        %v1198 = vlaneseq
        %v1199 = vshrl.u32 %v1198, 7
        %v1200 = vsub.s32 %v1030, %v1199
        %v1201 = vrot.slane %v654, %v1200
        %v1202 = vsel %vm1035, %v1201, %v1197
        %v1203 = vlaneseq
        %v1204 = vshrl.u32 %v1203, 7
        %v1205 = vsub.s32 %v1037, %v1204
        %v1206 = vrot.slane %v656, %v1205
        %v1207 = vsel %vm1042, %v1206, %v1202
        %v1208 = vlaneseq
        %v1209 = vshrl.u32 %v1208, 7
        %v1210 = vsub.s32 %v1044, %v1209
        %v1211 = vrot.slane %v658, %v1210
        %v1212 = vsel %vm1049, %v1211, %v1207
        %v1213 = vlaneseq
        %v1214 = vshrl.u32 %v1213, 7
        %v1215 = vsub.s32 %v1051, %v1214
        %v1216 = vrot.slane %v660, %v1215
        %v1217 = vsel %vm1056, %v1216, %v1212
        %v1218 = vlaneseq
        %v1219 = vshrl.u32 %v1218, 7
        %v1220 = vsub.s32 %v1058, %v1219
        %v1221 = vrot.slane %v662, %v1220
        %v1222 = vsel %vm1063, %v1221, %v1217
        %v1223 = vlaneseq
        %v1224 = vshrl.u32 %v1223, 7
        %v1225 = vsub.s32 %v825, %v1224
        %v1226 = vrot.slane %v664, %v1225
        %v1227 = vlaneseq
        %v1228 = vshrl.u32 %v1227, 7
        %v1229 = vsub.s32 %v960, %v1228
        %v1230 = vrot.slane %v666, %v1229
        %v1231 = vsel %vm965, %v1230, %v1226
        %v1232 = vlaneseq
        %v1233 = vshrl.u32 %v1232, 7
        %v1234 = vsub.s32 %v967, %v1233
        %v1235 = vrot.slane %v668, %v1234
        %v1236 = vsel %vm972, %v1235, %v1231
        %v1237 = vlaneseq
        %v1238 = vshrl.u32 %v1237, 7
        %v1239 = vsub.s32 %v974, %v1238
        %v1240 = vrot.slane %v670, %v1239
        %v1241 = vsel %vm979, %v1240, %v1236
        %v1242 = vlaneseq
        %v1243 = vshrl.u32 %v1242, 7
        %v1244 = vsub.s32 %v981, %v1243
        %v1245 = vrot.slane %v672, %v1244
        %v1246 = vsel %vm986, %v1245, %v1241
        %v1247 = vlaneseq
        %v1248 = vshrl.u32 %v1247, 7
        %v1249 = vsub.s32 %v988, %v1248
        %v1250 = vrot.slane %v674, %v1249
        %v1251 = vsel %vm993, %v1250, %v1246
        %v1252 = vlaneseq
        %v1253 = vshrl.u32 %v1252, 7
        %v1254 = vsub.s32 %v995, %v1253
        %v1255 = vrot.slane %v676, %v1254
        %v1256 = vsel %vm1000, %v1255, %v1251
        %v1257 = vlaneseq
        %v1258 = vshrl.u32 %v1257, 7
        %v1259 = vsub.s32 %v1002, %v1258
        %v1260 = vrot.slane %v678, %v1259
        %v1261 = vsel %vm1007, %v1260, %v1256
        %v1262 = vlaneseq
        %v1263 = vshrl.u32 %v1262, 7
        %v1264 = vsub.s32 %v1009, %v1263
        %v1265 = vrot.slane %v680, %v1264
        %v1266 = vsel %vm1014, %v1265, %v1261
        %v1267 = vlaneseq
        %v1268 = vshrl.u32 %v1267, 7
        %v1269 = vsub.s32 %v1016, %v1268
        %v1270 = vrot.slane %v682, %v1269
        %v1271 = vsel %vm1021, %v1270, %v1266
        %v1272 = vlaneseq
        %v1273 = vshrl.u32 %v1272, 7
        %v1274 = vsub.s32 %v1023, %v1273
        %v1275 = vrot.slane %v684, %v1274
        %v1276 = vsel %vm1028, %v1275, %v1271
        %v1277 = vlaneseq
        %v1278 = vshrl.u32 %v1277, 7
        %v1279 = vsub.s32 %v1030, %v1278
        %v1280 = vrot.slane %v686, %v1279
        %v1281 = vsel %vm1035, %v1280, %v1276
        %v1282 = vlaneseq
        %v1283 = vshrl.u32 %v1282, 7
        %v1284 = vsub.s32 %v1037, %v1283
        %v1285 = vrot.slane %v688, %v1284
        %v1286 = vsel %vm1042, %v1285, %v1281
        %v1287 = vlaneseq
        %v1288 = vshrl.u32 %v1287, 7
        %v1289 = vsub.s32 %v1044, %v1288
        %v1290 = vrot.slane %v690, %v1289
        %v1291 = vsel %vm1049, %v1290, %v1286
        %v1292 = vlaneseq
        %v1293 = vshrl.u32 %v1292, 7
        %v1294 = vsub.s32 %v1051, %v1293
        %v1295 = vrot.slane %v692, %v1294
        %v1296 = vsel %vm1056, %v1295, %v1291
        %v1297 = vlaneseq
        %v1298 = vshrl.u32 %v1297, 7
        %v1299 = vsub.s32 %v1058, %v1298
        %v1300 = vrot.slane %v694, %v1299
        %v1301 = vsel %vm1063, %v1300, %v1296
        %v1302 = vlaneseq
        %v1303 = vshrl.u32 %v1302, 7
        %v1304 = vsub.s32 %v825, %v1303
        %v1305 = vrot.slane %v696, %v1304
        %v1306 = vlaneseq
        %v1307 = vshrl.u32 %v1306, 7
        %v1308 = vsub.s32 %v960, %v1307
        %v1309 = vrot.slane %v698, %v1308
        %v1310 = vsel %vm965, %v1309, %v1305
        %v1311 = vlaneseq
        %v1312 = vshrl.u32 %v1311, 7
        %v1313 = vsub.s32 %v967, %v1312
        %v1314 = vrot.slane %v700, %v1313
        %v1315 = vsel %vm972, %v1314, %v1310
        %v1316 = vlaneseq
        %v1317 = vshrl.u32 %v1316, 7
        %v1318 = vsub.s32 %v974, %v1317
        %v1319 = vrot.slane %v702, %v1318
        %v1320 = vsel %vm979, %v1319, %v1315
        %v1321 = vlaneseq
        %v1322 = vshrl.u32 %v1321, 7
        %v1323 = vsub.s32 %v981, %v1322
        %v1324 = vrot.slane %v704, %v1323
        %v1325 = vsel %vm986, %v1324, %v1320
        %v1326 = vlaneseq
        %v1327 = vshrl.u32 %v1326, 7
        %v1328 = vsub.s32 %v988, %v1327
        %v1329 = vrot.slane %v706, %v1328
        %v1330 = vsel %vm993, %v1329, %v1325
        %v1331 = vlaneseq
        %v1332 = vshrl.u32 %v1331, 7
        %v1333 = vsub.s32 %v995, %v1332
        %v1334 = vrot.slane %v708, %v1333
        %v1335 = vsel %vm1000, %v1334, %v1330
        %v1336 = vlaneseq
        %v1337 = vshrl.u32 %v1336, 7
        %v1338 = vsub.s32 %v1002, %v1337
        %v1339 = vrot.slane %v710, %v1338
        %v1340 = vsel %vm1007, %v1339, %v1335
        %v1341 = vlaneseq
        %v1342 = vshrl.u32 %v1341, 7
        %v1343 = vsub.s32 %v1009, %v1342
        %v1344 = vrot.slane %v712, %v1343
        %v1345 = vsel %vm1014, %v1344, %v1340
        %v1346 = vlaneseq
        %v1347 = vshrl.u32 %v1346, 7
        %v1348 = vsub.s32 %v1016, %v1347
        %v1349 = vrot.slane %v714, %v1348
        %v1350 = vsel %vm1021, %v1349, %v1345
        %v1351 = vlaneseq
        %v1352 = vshrl.u32 %v1351, 7
        %v1353 = vsub.s32 %v1023, %v1352
        %v1354 = vrot.slane %v716, %v1353
        %v1355 = vsel %vm1028, %v1354, %v1350
        %v1356 = vlaneseq
        %v1357 = vshrl.u32 %v1356, 7
        %v1358 = vsub.s32 %v1030, %v1357
        %v1359 = vrot.slane %v718, %v1358
        %v1360 = vsel %vm1035, %v1359, %v1355
        %v1361 = vlaneseq
        %v1362 = vshrl.u32 %v1361, 7
        %v1363 = vsub.s32 %v1037, %v1362
        %v1364 = vrot.slane %v720, %v1363
        %v1365 = vsel %vm1042, %v1364, %v1360
        %v1366 = vlaneseq
        %v1367 = vshrl.u32 %v1366, 7
        %v1368 = vsub.s32 %v1044, %v1367
        %v1369 = vrot.slane %v722, %v1368
        %v1370 = vsel %vm1049, %v1369, %v1365
        %v1371 = vlaneseq
        %v1372 = vshrl.u32 %v1371, 7
        %v1373 = vsub.s32 %v1051, %v1372
        %v1374 = vrot.slane %v724, %v1373
        %v1375 = vsel %vm1056, %v1374, %v1370
        %v1376 = vlaneseq
        %v1377 = vshrl.u32 %v1376, 7
        %v1378 = vsub.s32 %v1058, %v1377
        %v1379 = vrot.slane %v726, %v1378
        %v1380 = vsel %vm1063, %v1379, %v1375
        %v1381 = vlaneseq
        %v1382 = vshrl.u32 %v1381, 7
        %v1383 = vsub.s32 %v825, %v1382
        %v1384 = vrot.slane %v728, %v1383
        %v1385 = vlaneseq
        %v1386 = vshrl.u32 %v1385, 7
        %v1387 = vsub.s32 %v960, %v1386
        %v1388 = vrot.slane %v730, %v1387
        %v1389 = vsel %vm965, %v1388, %v1384
        %v1390 = vlaneseq
        %v1391 = vshrl.u32 %v1390, 7
        %v1392 = vsub.s32 %v967, %v1391
        %v1393 = vrot.slane %v732, %v1392
        %v1394 = vsel %vm972, %v1393, %v1389
        %v1395 = vlaneseq
        %v1396 = vshrl.u32 %v1395, 7
        %v1397 = vsub.s32 %v974, %v1396
        %v1398 = vrot.slane %v734, %v1397
        %v1399 = vsel %vm979, %v1398, %v1394
        %v1400 = vlaneseq
        %v1401 = vshrl.u32 %v1400, 7
        %v1402 = vsub.s32 %v981, %v1401
        %v1403 = vrot.slane %v736, %v1402
        %v1404 = vsel %vm986, %v1403, %v1399
        %v1405 = vlaneseq
        %v1406 = vshrl.u32 %v1405, 7
        %v1407 = vsub.s32 %v988, %v1406
        %v1408 = vrot.slane %v738, %v1407
        %v1409 = vsel %vm993, %v1408, %v1404
        %v1410 = vlaneseq
        %v1411 = vshrl.u32 %v1410, 7
        %v1412 = vsub.s32 %v995, %v1411
        %v1413 = vrot.slane %v740, %v1412
        %v1414 = vsel %vm1000, %v1413, %v1409
        %v1415 = vlaneseq
        %v1416 = vshrl.u32 %v1415, 7
        %v1417 = vsub.s32 %v1002, %v1416
        %v1418 = vrot.slane %v742, %v1417
        %v1419 = vsel %vm1007, %v1418, %v1414
        %v1420 = vlaneseq
        %v1421 = vshrl.u32 %v1420, 7
        %v1422 = vsub.s32 %v1009, %v1421
        %v1423 = vrot.slane %v744, %v1422
        %v1424 = vsel %vm1014, %v1423, %v1419
        %v1425 = vlaneseq
        %v1426 = vshrl.u32 %v1425, 7
        %v1427 = vsub.s32 %v1016, %v1426
        %v1428 = vrot.slane %v746, %v1427
        %v1429 = vsel %vm1021, %v1428, %v1424
        %v1430 = vlaneseq
        %v1431 = vshrl.u32 %v1430, 7
        %v1432 = vsub.s32 %v1023, %v1431
        %v1433 = vrot.slane %v748, %v1432
        %v1434 = vsel %vm1028, %v1433, %v1429
        %v1435 = vlaneseq
        %v1436 = vshrl.u32 %v1435, 7
        %v1437 = vsub.s32 %v1030, %v1436
        %v1438 = vrot.slane %v750, %v1437
        %v1439 = vsel %vm1035, %v1438, %v1434
        %v1440 = vlaneseq
        %v1441 = vshrl.u32 %v1440, 7
        %v1442 = vsub.s32 %v1037, %v1441
        %v1443 = vrot.slane %v752, %v1442
        %v1444 = vsel %vm1042, %v1443, %v1439
        %v1445 = vlaneseq
        %v1446 = vshrl.u32 %v1445, 7
        %v1447 = vsub.s32 %v1044, %v1446
        %v1448 = vrot.slane %v754, %v1447
        %v1449 = vsel %vm1049, %v1448, %v1444
        %v1450 = vlaneseq
        %v1451 = vshrl.u32 %v1450, 7
        %v1452 = vsub.s32 %v1051, %v1451
        %v1453 = vrot.slane %v756, %v1452
        %v1454 = vsel %vm1056, %v1453, %v1449
        %v1455 = vlaneseq
        %v1456 = vshrl.u32 %v1455, 7
        %v1457 = vsub.s32 %v1058, %v1456
        %v1458 = vrot.slane %v758, %v1457
        %v1459 = vsel %vm1063, %v1458, %v1454
        %v1460 = vlaneseq
        %v1461 = vshrl.u32 %v1460, 7
        %v1462 = vsub.s32 %v825, %v1461
        %v1463 = vrot.slane %v760, %v1462
        %v1464 = vlaneseq
        %v1465 = vshrl.u32 %v1464, 7
        %v1466 = vsub.s32 %v960, %v1465
        %v1467 = vrot.slane %v762, %v1466
        %v1468 = vsel %vm965, %v1467, %v1463
        %v1469 = vlaneseq
        %v1470 = vshrl.u32 %v1469, 7
        %v1471 = vsub.s32 %v967, %v1470
        %v1472 = vrot.slane %v764, %v1471
        %v1473 = vsel %vm972, %v1472, %v1468
        %v1474 = vlaneseq
        %v1475 = vshrl.u32 %v1474, 7
        %v1476 = vsub.s32 %v974, %v1475
        %v1477 = vrot.slane %v766, %v1476
        %v1478 = vsel %vm979, %v1477, %v1473
        %v1479 = vlaneseq
        %v1480 = vshrl.u32 %v1479, 7
        %v1481 = vsub.s32 %v981, %v1480
        %v1482 = vrot.slane %v768, %v1481
        %v1483 = vsel %vm986, %v1482, %v1478
        %v1484 = vlaneseq
        %v1485 = vshrl.u32 %v1484, 7
        %v1486 = vsub.s32 %v988, %v1485
        %v1487 = vrot.slane %v770, %v1486
        %v1488 = vsel %vm993, %v1487, %v1483
        %v1489 = vlaneseq
        %v1490 = vshrl.u32 %v1489, 7
        %v1491 = vsub.s32 %v995, %v1490
        %v1492 = vrot.slane %v772, %v1491
        %v1493 = vsel %vm1000, %v1492, %v1488
        %v1494 = vlaneseq
        %v1495 = vshrl.u32 %v1494, 7
        %v1496 = vsub.s32 %v1002, %v1495
        %v1497 = vrot.slane %v774, %v1496
        %v1498 = vsel %vm1007, %v1497, %v1493
        %v1499 = vlaneseq
        %v1500 = vshrl.u32 %v1499, 7
        %v1501 = vsub.s32 %v1009, %v1500
        %v1502 = vrot.slane %v776, %v1501
        %v1503 = vsel %vm1014, %v1502, %v1498
        %v1504 = vlaneseq
        %v1505 = vshrl.u32 %v1504, 7
        %v1506 = vsub.s32 %v1016, %v1505
        %v1507 = vrot.slane %v778, %v1506
        %v1508 = vsel %vm1021, %v1507, %v1503
        %v1509 = vlaneseq
        %v1510 = vshrl.u32 %v1509, 7
        %v1511 = vsub.s32 %v1023, %v1510
        %v1512 = vrot.slane %v780, %v1511
        %v1513 = vsel %vm1028, %v1512, %v1508
        %v1514 = vlaneseq
        %v1515 = vshrl.u32 %v1514, 7
        %v1516 = vsub.s32 %v1030, %v1515
        %v1517 = vrot.slane %v782, %v1516
        %v1518 = vsel %vm1035, %v1517, %v1513
        %v1519 = vlaneseq
        %v1520 = vshrl.u32 %v1519, 7
        %v1521 = vsub.s32 %v1037, %v1520
        %v1522 = vrot.slane %v784, %v1521
        %v1523 = vsel %vm1042, %v1522, %v1518
        %v1524 = vlaneseq
        %v1525 = vshrl.u32 %v1524, 7
        %v1526 = vsub.s32 %v1044, %v1525
        %v1527 = vrot.slane %v786, %v1526
        %v1528 = vsel %vm1049, %v1527, %v1523
        %v1529 = vlaneseq
        %v1530 = vshrl.u32 %v1529, 7
        %v1531 = vsub.s32 %v1051, %v1530
        %v1532 = vrot.slane %v788, %v1531
        %v1533 = vsel %vm1056, %v1532, %v1528
        %v1534 = vlaneseq
        %v1535 = vshrl.u32 %v1534, 7
        %v1536 = vsub.s32 %v1058, %v1535
        %v1537 = vrot.slane %v790, %v1536
        %v1538 = vsel %vm1063, %v1537, %v1533
        %v1539 = vlaneseq
        %v1540 = vshrl.u32 %v1539, 7
        %v1541 = vsub.s32 %v825, %v1540
        %v1542 = vrot.slane %v792, %v1541
        %v1543 = vlaneseq
        %v1544 = vshrl.u32 %v1543, 7
        %v1545 = vsub.s32 %v960, %v1544
        %v1546 = vrot.slane %v794, %v1545
        %v1547 = vsel %vm965, %v1546, %v1542
        %v1548 = vlaneseq
        %v1549 = vshrl.u32 %v1548, 7
        %v1550 = vsub.s32 %v967, %v1549
        %v1551 = vrot.slane %v796, %v1550
        %v1552 = vsel %vm972, %v1551, %v1547
        %v1553 = vlaneseq
        %v1554 = vshrl.u32 %v1553, 7
        %v1555 = vsub.s32 %v974, %v1554
        %v1556 = vrot.slane %v798, %v1555
        %v1557 = vsel %vm979, %v1556, %v1552
        %v1558 = vlaneseq
        %v1559 = vshrl.u32 %v1558, 7
        %v1560 = vsub.s32 %v981, %v1559
        %v1561 = vrot.slane %v800, %v1560
        %v1562 = vsel %vm986, %v1561, %v1557
        %v1563 = vlaneseq
        %v1564 = vshrl.u32 %v1563, 7
        %v1565 = vsub.s32 %v988, %v1564
        %v1566 = vrot.slane %v802, %v1565
        %v1567 = vsel %vm993, %v1566, %v1562
        %v1568 = vlaneseq
        %v1569 = vshrl.u32 %v1568, 7
        %v1570 = vsub.s32 %v995, %v1569
        %v1571 = vrot.slane %v804, %v1570
        %v1572 = vsel %vm1000, %v1571, %v1567
        %v1573 = vlaneseq
        %v1574 = vshrl.u32 %v1573, 7
        %v1575 = vsub.s32 %v1002, %v1574
        %v1576 = vrot.slane %v806, %v1575
        %v1577 = vsel %vm1007, %v1576, %v1572
        %v1578 = vlaneseq
        %v1579 = vshrl.u32 %v1578, 7
        %v1580 = vsub.s32 %v1009, %v1579
        %v1581 = vrot.slane %v808, %v1580
        %v1582 = vsel %vm1014, %v1581, %v1577
        %v1583 = vlaneseq
        %v1584 = vshrl.u32 %v1583, 7
        %v1585 = vsub.s32 %v1016, %v1584
        %v1586 = vrot.slane %v810, %v1585
        %v1587 = vsel %vm1021, %v1586, %v1582
        %v1588 = vlaneseq
        %v1589 = vshrl.u32 %v1588, 7
        %v1590 = vsub.s32 %v1023, %v1589
        %v1591 = vrot.slane %v812, %v1590
        %v1592 = vsel %vm1028, %v1591, %v1587
        %v1593 = vlaneseq
        %v1594 = vshrl.u32 %v1593, 7
        %v1595 = vsub.s32 %v1030, %v1594
        %v1596 = vrot.slane %v814, %v1595
        %v1597 = vsel %vm1035, %v1596, %v1592
        %v1598 = vlaneseq
        %v1599 = vshrl.u32 %v1598, 7
        %v1600 = vsub.s32 %v1037, %v1599
        %v1601 = vrot.slane %v816, %v1600
        %v1602 = vsel %vm1042, %v1601, %v1597
        %v1603 = vlaneseq
        %v1604 = vshrl.u32 %v1603, 7
        %v1605 = vsub.s32 %v1044, %v1604
        %v1606 = vrot.slane %v818, %v1605
        %v1607 = vsel %vm1049, %v1606, %v1602
        %v1608 = vlaneseq
        %v1609 = vshrl.u32 %v1608, 7
        %v1610 = vsub.s32 %v1051, %v1609
        %v1611 = vrot.slane %v820, %v1610
        %v1612 = vsel %vm1056, %v1611, %v1607
        %v1613 = vlaneseq
        %v1614 = vshrl.u32 %v1613, 7
        %v1615 = vsub.s32 %v1058, %v1614
        %v1616 = vrot.slane %v822, %v1615
        %v1617 = vsel %vm1063, %v1616, %v1612
        %vm1618 = vcmask 1041409
        %v1619 = vsel %vm1618, %v1143, %v1064
        %vm1620 = vcmask 1042434
        %v1621 = vsel %vm1620, %v1222, %v1619
        %vm1622 = vcmask 1043459
        %v1623 = vsel %vm1622, %v1301, %v1621
        %vm1624 = vcmask 1044484
        %v1625 = vsel %vm1624, %v1380, %v1623
        %vm1626 = vcmask 1045509
        %v1627 = vsel %vm1626, %v1459, %v1625
        %vm1628 = vcmask 1046534
        %v1629 = vsel %vm1628, %v1538, %v1627
        %vm1630 = vcmask 1047559
        %v1631 = vsel %vm1630, %v1617, %v1629
        %v1633 = vsel %vm823, %v1631, %v827
        %1634 = vmax.xlane.f32.xlu0 %v1633
        %v1635 = vpop.xlane.xlu0 %1634
        %v1636 = vsub.f32 %v1633, %v1635
        %v1637 = vmul.f32 %v1636, 1.442695
        %v1638 = vpow.pop %v1637
        %1639 = vadd.xlane.f32.xlu0 %v1638
        %v1640 = vpop.xlane.xlu0 %1639
        %v1641 = vrcp.pop %v1640
        %v1642 = vmul.f32 %v1638, %v1641
        %1643 = vst [vmem:[%s291] sm:$0xff] %v1642
        %v1644 = vsel %vm823, %v1642, 0.0
        %1645 = vadd.xlane.f32.xlu0 %v1644
        %v1646 = vpop.xlane.xlu0 %1645
        %vm1647 = vcmask 7168
        %1648 = vst.msk [vmem:[%s302] sm:$0xff] %vm1647, %v1646
        %v1649 = vlaneseq
        %v1650 = vshrl.u32 %v1649, 7
        %v1651 = vsub.s32 0, %v1650
        %v1652 = vrot.slane %v1644, %v1651
        %1654 = vbcast.lane.b32.xlu0 %v1652, 256
        %v1655 = vpop.permute.xlu0 %1654
        %s1657 = sor.u32 256, 8
        %1658 = vbcast.lane.b32.xlu0 %v1652, %s1657
        %v1659 = vpop.permute.xlu0 %1658
        %s1661 = sor.u32 256, 16
        %1662 = vbcast.lane.b32.xlu0 %v1652, %s1661
        %v1663 = vpop.permute.xlu0 %1662
        %s1665 = sor.u32 256, 24
        %1666 = vbcast.lane.b32.xlu0 %v1652, %s1665
        %v1667 = vpop.permute.xlu0 %1666
        %s1669 = sor.u32 256, 32
        %1670 = vbcast.lane.b32.xlu0 %v1652, %s1669
        %v1671 = vpop.permute.xlu0 %1670
        %s1673 = sor.u32 256, 40
        %1674 = vbcast.lane.b32.xlu0 %v1652, %s1673
        %v1675 = vpop.permute.xlu0 %1674
        %s1677 = sor.u32 256, 48
        %1678 = vbcast.lane.b32.xlu0 %v1652, %s1677
        %v1679 = vpop.permute.xlu0 %1678
        %s1681 = sor.u32 256, 56
        %1682 = vbcast.lane.b32.xlu0 %v1652, %s1681
        %v1683 = vpop.permute.xlu0 %1682
        %s1685 = sor.u32 256, 64
        %1686 = vbcast.lane.b32.xlu0 %v1652, %s1685
        %v1687 = vpop.permute.xlu0 %1686
        %s1689 = sor.u32 256, 72
        %1690 = vbcast.lane.b32.xlu0 %v1652, %s1689
        %v1691 = vpop.permute.xlu0 %1690
        %s1693 = sor.u32 256, 80
        %1694 = vbcast.lane.b32.xlu0 %v1652, %s1693
        %v1695 = vpop.permute.xlu0 %1694
        %s1697 = sor.u32 256, 88
        %1698 = vbcast.lane.b32.xlu0 %v1652, %s1697
        %v1699 = vpop.permute.xlu0 %1698
        %s1701 = sor.u32 256, 96
        %1702 = vbcast.lane.b32.xlu0 %v1652, %s1701
        %v1703 = vpop.permute.xlu0 %1702
        %s1705 = sor.u32 256, 104
        %1706 = vbcast.lane.b32.xlu0 %v1652, %s1705
        %v1707 = vpop.permute.xlu0 %1706
        %s1709 = sor.u32 256, 112
        %1710 = vbcast.lane.b32.xlu0 %v1652, %s1709
        %v1711 = vpop.permute.xlu0 %1710
        %s1713 = sor.u32 256, 120
        %1714 = vbcast.lane.b32.xlu0 %v1652, %s1713
        %v1715 = vpop.permute.xlu0 %1714
        %v1716 = vlaneseq
        %v1717 = vshrl.u32 %v1716, 7
        %v1718 = vsub.s32 1, %v1717
        %v1719 = vrot.slane %v1644, %v1718
        %1721 = vbcast.lane.b32.xlu0 %v1719, 256
        %v1722 = vpop.permute.xlu0 %1721
        %s1724 = sor.u32 256, 8
        %1725 = vbcast.lane.b32.xlu0 %v1719, %s1724
        %v1726 = vpop.permute.xlu0 %1725
        %s1728 = sor.u32 256, 16
        %1729 = vbcast.lane.b32.xlu0 %v1719, %s1728
        %v1730 = vpop.permute.xlu0 %1729
        %s1732 = sor.u32 256, 24
        %1733 = vbcast.lane.b32.xlu0 %v1719, %s1732
        %v1734 = vpop.permute.xlu0 %1733
        %s1736 = sor.u32 256, 32
        %1737 = vbcast.lane.b32.xlu0 %v1719, %s1736
        %v1738 = vpop.permute.xlu0 %1737
        %s1740 = sor.u32 256, 40
        %1741 = vbcast.lane.b32.xlu0 %v1719, %s1740
        %v1742 = vpop.permute.xlu0 %1741
        %s1744 = sor.u32 256, 48
        %1745 = vbcast.lane.b32.xlu0 %v1719, %s1744
        %v1746 = vpop.permute.xlu0 %1745
        %s1748 = sor.u32 256, 56
        %1749 = vbcast.lane.b32.xlu0 %v1719, %s1748
        %v1750 = vpop.permute.xlu0 %1749
        %s1752 = sor.u32 256, 64
        %1753 = vbcast.lane.b32.xlu0 %v1719, %s1752
        %v1754 = vpop.permute.xlu0 %1753
        %s1756 = sor.u32 256, 72
        %1757 = vbcast.lane.b32.xlu0 %v1719, %s1756
        %v1758 = vpop.permute.xlu0 %1757
        %s1760 = sor.u32 256, 80
        %1761 = vbcast.lane.b32.xlu0 %v1719, %s1760
        %v1762 = vpop.permute.xlu0 %1761
        %s1764 = sor.u32 256, 88
        %1765 = vbcast.lane.b32.xlu0 %v1719, %s1764
        %v1766 = vpop.permute.xlu0 %1765
        %s1768 = sor.u32 256, 96
        %1769 = vbcast.lane.b32.xlu0 %v1719, %s1768
        %v1770 = vpop.permute.xlu0 %1769
        %s1772 = sor.u32 256, 104
        %1773 = vbcast.lane.b32.xlu0 %v1719, %s1772
        %v1774 = vpop.permute.xlu0 %1773
        %s1776 = sor.u32 256, 112
        %1777 = vbcast.lane.b32.xlu0 %v1719, %s1776
        %v1778 = vpop.permute.xlu0 %1777
        %s1780 = sor.u32 256, 120
        %1781 = vbcast.lane.b32.xlu0 %v1719, %s1780
        %v1782 = vpop.permute.xlu0 %1781
        %v1783 = vlaneseq
        %v1784 = vshrl.u32 %v1783, 7
        %v1785 = vsub.s32 2, %v1784
        %v1786 = vrot.slane %v1644, %v1785
        %1788 = vbcast.lane.b32.xlu0 %v1786, 256
        %v1789 = vpop.permute.xlu0 %1788
        %s1791 = sor.u32 256, 8
        %1792 = vbcast.lane.b32.xlu0 %v1786, %s1791
        %v1793 = vpop.permute.xlu0 %1792
        %s1795 = sor.u32 256, 16
        %1796 = vbcast.lane.b32.xlu0 %v1786, %s1795
        %v1797 = vpop.permute.xlu0 %1796
        %s1799 = sor.u32 256, 24
        %1800 = vbcast.lane.b32.xlu0 %v1786, %s1799
        %v1801 = vpop.permute.xlu0 %1800
        %s1803 = sor.u32 256, 32
        %1804 = vbcast.lane.b32.xlu0 %v1786, %s1803
        %v1805 = vpop.permute.xlu0 %1804
        %s1807 = sor.u32 256, 40
        %1808 = vbcast.lane.b32.xlu0 %v1786, %s1807
        %v1809 = vpop.permute.xlu0 %1808
        %s1811 = sor.u32 256, 48
        %1812 = vbcast.lane.b32.xlu0 %v1786, %s1811
        %v1813 = vpop.permute.xlu0 %1812
        %s1815 = sor.u32 256, 56
        %1816 = vbcast.lane.b32.xlu0 %v1786, %s1815
        %v1817 = vpop.permute.xlu0 %1816
        %s1819 = sor.u32 256, 64
        %1820 = vbcast.lane.b32.xlu0 %v1786, %s1819
        %v1821 = vpop.permute.xlu0 %1820
        %s1823 = sor.u32 256, 72
        %1824 = vbcast.lane.b32.xlu0 %v1786, %s1823
        %v1825 = vpop.permute.xlu0 %1824
        %s1827 = sor.u32 256, 80
        %1828 = vbcast.lane.b32.xlu0 %v1786, %s1827
        %v1829 = vpop.permute.xlu0 %1828
        %s1831 = sor.u32 256, 88
        %1832 = vbcast.lane.b32.xlu0 %v1786, %s1831
        %v1833 = vpop.permute.xlu0 %1832
        %s1835 = sor.u32 256, 96
        %1836 = vbcast.lane.b32.xlu0 %v1786, %s1835
        %v1837 = vpop.permute.xlu0 %1836
        %s1839 = sor.u32 256, 104
        %1840 = vbcast.lane.b32.xlu0 %v1786, %s1839
        %v1841 = vpop.permute.xlu0 %1840
        %s1843 = sor.u32 256, 112
        %1844 = vbcast.lane.b32.xlu0 %v1786, %s1843
        %v1845 = vpop.permute.xlu0 %1844
        %s1847 = sor.u32 256, 120
        %1848 = vbcast.lane.b32.xlu0 %v1786, %s1847
        %v1849 = vpop.permute.xlu0 %1848
        %v1850 = vlaneseq
        %v1851 = vshrl.u32 %v1850, 7
        %v1852 = vsub.s32 3, %v1851
        %v1853 = vrot.slane %v1644, %v1852
        %1855 = vbcast.lane.b32.xlu0 %v1853, 256
        %v1856 = vpop.permute.xlu0 %1855
        %s1858 = sor.u32 256, 8
        %1859 = vbcast.lane.b32.xlu0 %v1853, %s1858
        %v1860 = vpop.permute.xlu0 %1859
        %s1862 = sor.u32 256, 16
        %1863 = vbcast.lane.b32.xlu0 %v1853, %s1862
        %v1864 = vpop.permute.xlu0 %1863
        %s1866 = sor.u32 256, 24
        %1867 = vbcast.lane.b32.xlu0 %v1853, %s1866
        %v1868 = vpop.permute.xlu0 %1867
        %s1870 = sor.u32 256, 32
        %1871 = vbcast.lane.b32.xlu0 %v1853, %s1870
        %v1872 = vpop.permute.xlu0 %1871
        %s1874 = sor.u32 256, 40
        %1875 = vbcast.lane.b32.xlu0 %v1853, %s1874
        %v1876 = vpop.permute.xlu0 %1875
        %s1878 = sor.u32 256, 48
        %1879 = vbcast.lane.b32.xlu0 %v1853, %s1878
        %v1880 = vpop.permute.xlu0 %1879
        %s1882 = sor.u32 256, 56
        %1883 = vbcast.lane.b32.xlu0 %v1853, %s1882
        %v1884 = vpop.permute.xlu0 %1883
        %s1886 = sor.u32 256, 64
        %1887 = vbcast.lane.b32.xlu0 %v1853, %s1886
        %v1888 = vpop.permute.xlu0 %1887
        %s1890 = sor.u32 256, 72
        %1891 = vbcast.lane.b32.xlu0 %v1853, %s1890
        %v1892 = vpop.permute.xlu0 %1891
        %s1894 = sor.u32 256, 80
        %1895 = vbcast.lane.b32.xlu0 %v1853, %s1894
        %v1896 = vpop.permute.xlu0 %1895
        %s1898 = sor.u32 256, 88
        %1899 = vbcast.lane.b32.xlu0 %v1853, %s1898
        %v1900 = vpop.permute.xlu0 %1899
        %s1902 = sor.u32 256, 96
        %1903 = vbcast.lane.b32.xlu0 %v1853, %s1902
        %v1904 = vpop.permute.xlu0 %1903
        %s1906 = sor.u32 256, 104
        %1907 = vbcast.lane.b32.xlu0 %v1853, %s1906
        %v1908 = vpop.permute.xlu0 %1907
        %s1910 = sor.u32 256, 112
        %1911 = vbcast.lane.b32.xlu0 %v1853, %s1910
        %v1912 = vpop.permute.xlu0 %1911
        %s1914 = sor.u32 256, 120
        %1915 = vbcast.lane.b32.xlu0 %v1853, %s1914
        %v1916 = vpop.permute.xlu0 %1915
        %v1917 = vlaneseq
        %v1918 = vshrl.u32 %v1917, 7
        %v1919 = vsub.s32 4, %v1918
        %v1920 = vrot.slane %v1644, %v1919
        %1922 = vbcast.lane.b32.xlu0 %v1920, 256
        %v1923 = vpop.permute.xlu0 %1922
        %s1925 = sor.u32 256, 8
        %1926 = vbcast.lane.b32.xlu0 %v1920, %s1925
        %v1927 = vpop.permute.xlu0 %1926
        %s1929 = sor.u32 256, 16
        %1930 = vbcast.lane.b32.xlu0 %v1920, %s1929
        %v1931 = vpop.permute.xlu0 %1930
        %s1933 = sor.u32 256, 24
        %1934 = vbcast.lane.b32.xlu0 %v1920, %s1933
        %v1935 = vpop.permute.xlu0 %1934
        %s1937 = sor.u32 256, 32
        %1938 = vbcast.lane.b32.xlu0 %v1920, %s1937
        %v1939 = vpop.permute.xlu0 %1938
        %s1941 = sor.u32 256, 40
        %1942 = vbcast.lane.b32.xlu0 %v1920, %s1941
        %v1943 = vpop.permute.xlu0 %1942
        %s1945 = sor.u32 256, 48
        %1946 = vbcast.lane.b32.xlu0 %v1920, %s1945
        %v1947 = vpop.permute.xlu0 %1946
        %s1949 = sor.u32 256, 56
        %1950 = vbcast.lane.b32.xlu0 %v1920, %s1949
        %v1951 = vpop.permute.xlu0 %1950
        %s1953 = sor.u32 256, 64
        %1954 = vbcast.lane.b32.xlu0 %v1920, %s1953
        %v1955 = vpop.permute.xlu0 %1954
        %s1957 = sor.u32 256, 72
        %1958 = vbcast.lane.b32.xlu0 %v1920, %s1957
        %v1959 = vpop.permute.xlu0 %1958
        %s1961 = sor.u32 256, 80
        %1962 = vbcast.lane.b32.xlu0 %v1920, %s1961
        %v1963 = vpop.permute.xlu0 %1962
        %s1965 = sor.u32 256, 88
        %1966 = vbcast.lane.b32.xlu0 %v1920, %s1965
        %v1967 = vpop.permute.xlu0 %1966
        %s1969 = sor.u32 256, 96
        %1970 = vbcast.lane.b32.xlu0 %v1920, %s1969
        %v1971 = vpop.permute.xlu0 %1970
        %s1973 = sor.u32 256, 104
        %1974 = vbcast.lane.b32.xlu0 %v1920, %s1973
        %v1975 = vpop.permute.xlu0 %1974
        %s1977 = sor.u32 256, 112
        %1978 = vbcast.lane.b32.xlu0 %v1920, %s1977
        %v1979 = vpop.permute.xlu0 %1978
        %s1981 = sor.u32 256, 120
        %1982 = vbcast.lane.b32.xlu0 %v1920, %s1981
        %v1983 = vpop.permute.xlu0 %1982
        %v1984 = vlaneseq
        %v1985 = vshrl.u32 %v1984, 7
        %v1986 = vsub.s32 5, %v1985
        %v1987 = vrot.slane %v1644, %v1986
        %1989 = vbcast.lane.b32.xlu0 %v1987, 256
        %v1990 = vpop.permute.xlu0 %1989
        %s1992 = sor.u32 256, 8
        %1993 = vbcast.lane.b32.xlu0 %v1987, %s1992
        %v1994 = vpop.permute.xlu0 %1993
        %s1996 = sor.u32 256, 16
        %1997 = vbcast.lane.b32.xlu0 %v1987, %s1996
        %v1998 = vpop.permute.xlu0 %1997
        %s2000 = sor.u32 256, 24
        %2001 = vbcast.lane.b32.xlu0 %v1987, %s2000
        %v2002 = vpop.permute.xlu0 %2001
        %s2004 = sor.u32 256, 32
        %2005 = vbcast.lane.b32.xlu0 %v1987, %s2004
        %v2006 = vpop.permute.xlu0 %2005
        %s2008 = sor.u32 256, 40
        %2009 = vbcast.lane.b32.xlu0 %v1987, %s2008
        %v2010 = vpop.permute.xlu0 %2009
        %s2012 = sor.u32 256, 48
        %2013 = vbcast.lane.b32.xlu0 %v1987, %s2012
        %v2014 = vpop.permute.xlu0 %2013
        %s2016 = sor.u32 256, 56
        %2017 = vbcast.lane.b32.xlu0 %v1987, %s2016
        %v2018 = vpop.permute.xlu0 %2017
        %s2020 = sor.u32 256, 64
        %2021 = vbcast.lane.b32.xlu0 %v1987, %s2020
        %v2022 = vpop.permute.xlu0 %2021
        %s2024 = sor.u32 256, 72
        %2025 = vbcast.lane.b32.xlu0 %v1987, %s2024
        %v2026 = vpop.permute.xlu0 %2025
        %s2028 = sor.u32 256, 80
        %2029 = vbcast.lane.b32.xlu0 %v1987, %s2028
        %v2030 = vpop.permute.xlu0 %2029
        %s2032 = sor.u32 256, 88
        %2033 = vbcast.lane.b32.xlu0 %v1987, %s2032
        %v2034 = vpop.permute.xlu0 %2033
        %s2036 = sor.u32 256, 96
        %2037 = vbcast.lane.b32.xlu0 %v1987, %s2036
        %v2038 = vpop.permute.xlu0 %2037
        %s2040 = sor.u32 256, 104
        %2041 = vbcast.lane.b32.xlu0 %v1987, %s2040
        %v2042 = vpop.permute.xlu0 %2041
        %s2044 = sor.u32 256, 112
        %2045 = vbcast.lane.b32.xlu0 %v1987, %s2044
        %v2046 = vpop.permute.xlu0 %2045
        %s2048 = sor.u32 256, 120
        %2049 = vbcast.lane.b32.xlu0 %v1987, %s2048
        %v2050 = vpop.permute.xlu0 %2049
        %v2051 = vlaneseq
        %v2052 = vshrl.u32 %v2051, 7
        %v2053 = vsub.s32 6, %v2052
        %v2054 = vrot.slane %v1644, %v2053
        %2056 = vbcast.lane.b32.xlu0 %v2054, 256
        %v2057 = vpop.permute.xlu0 %2056
        %s2059 = sor.u32 256, 8
        %2060 = vbcast.lane.b32.xlu0 %v2054, %s2059
        %v2061 = vpop.permute.xlu0 %2060
        %s2063 = sor.u32 256, 16
        %2064 = vbcast.lane.b32.xlu0 %v2054, %s2063
        %v2065 = vpop.permute.xlu0 %2064
        %s2067 = sor.u32 256, 24
        %2068 = vbcast.lane.b32.xlu0 %v2054, %s2067
        %v2069 = vpop.permute.xlu0 %2068
        %s2071 = sor.u32 256, 32
        %2072 = vbcast.lane.b32.xlu0 %v2054, %s2071
        %v2073 = vpop.permute.xlu0 %2072
        %s2075 = sor.u32 256, 40
        %2076 = vbcast.lane.b32.xlu0 %v2054, %s2075
        %v2077 = vpop.permute.xlu0 %2076
        %s2079 = sor.u32 256, 48
        %2080 = vbcast.lane.b32.xlu0 %v2054, %s2079
        %v2081 = vpop.permute.xlu0 %2080
        %s2083 = sor.u32 256, 56
        %2084 = vbcast.lane.b32.xlu0 %v2054, %s2083
        %v2085 = vpop.permute.xlu0 %2084
        %s2087 = sor.u32 256, 64
        %2088 = vbcast.lane.b32.xlu0 %v2054, %s2087
        %v2089 = vpop.permute.xlu0 %2088
        %s2091 = sor.u32 256, 72
        %2092 = vbcast.lane.b32.xlu0 %v2054, %s2091
        %v2093 = vpop.permute.xlu0 %2092
        %s2095 = sor.u32 256, 80
        %2096 = vbcast.lane.b32.xlu0 %v2054, %s2095
        %v2097 = vpop.permute.xlu0 %2096
        %s2099 = sor.u32 256, 88
        %2100 = vbcast.lane.b32.xlu0 %v2054, %s2099
        %v2101 = vpop.permute.xlu0 %2100
        %s2103 = sor.u32 256, 96
        %2104 = vbcast.lane.b32.xlu0 %v2054, %s2103
        %v2105 = vpop.permute.xlu0 %2104
        %s2107 = sor.u32 256, 104
        %2108 = vbcast.lane.b32.xlu0 %v2054, %s2107
        %v2109 = vpop.permute.xlu0 %2108
        %s2111 = sor.u32 256, 112
        %2112 = vbcast.lane.b32.xlu0 %v2054, %s2111
        %v2113 = vpop.permute.xlu0 %2112
        %s2115 = sor.u32 256, 120
        %2116 = vbcast.lane.b32.xlu0 %v2054, %s2115
        %v2117 = vpop.permute.xlu0 %2116
        %v2118 = vlaneseq
        %v2119 = vshrl.u32 %v2118, 7
        %v2120 = vsub.s32 7, %v2119
        %v2121 = vrot.slane %v1644, %v2120
        %2123 = vbcast.lane.b32.xlu0 %v2121, 256
        %v2124 = vpop.permute.xlu0 %2123
        %s2126 = sor.u32 256, 8
        %2127 = vbcast.lane.b32.xlu0 %v2121, %s2126
        %v2128 = vpop.permute.xlu0 %2127
        %s2130 = sor.u32 256, 16
        %2131 = vbcast.lane.b32.xlu0 %v2121, %s2130
        %v2132 = vpop.permute.xlu0 %2131
        %s2134 = sor.u32 256, 24
        %2135 = vbcast.lane.b32.xlu0 %v2121, %s2134
        %v2136 = vpop.permute.xlu0 %2135
        %s2138 = sor.u32 256, 32
        %2139 = vbcast.lane.b32.xlu0 %v2121, %s2138
        %v2140 = vpop.permute.xlu0 %2139
        %s2142 = sor.u32 256, 40
        %2143 = vbcast.lane.b32.xlu0 %v2121, %s2142
        %v2144 = vpop.permute.xlu0 %2143
        %s2146 = sor.u32 256, 48
        %2147 = vbcast.lane.b32.xlu0 %v2121, %s2146
        %v2148 = vpop.permute.xlu0 %2147
        %s2150 = sor.u32 256, 56
        %2151 = vbcast.lane.b32.xlu0 %v2121, %s2150
        %v2152 = vpop.permute.xlu0 %2151
        %s2154 = sor.u32 256, 64
        %2155 = vbcast.lane.b32.xlu0 %v2121, %s2154
        %v2156 = vpop.permute.xlu0 %2155
        %s2158 = sor.u32 256, 72
        %2159 = vbcast.lane.b32.xlu0 %v2121, %s2158
        %v2160 = vpop.permute.xlu0 %2159
        %s2162 = sor.u32 256, 80
        %2163 = vbcast.lane.b32.xlu0 %v2121, %s2162
        %v2164 = vpop.permute.xlu0 %2163
        %s2166 = sor.u32 256, 88
        %2167 = vbcast.lane.b32.xlu0 %v2121, %s2166
        %v2168 = vpop.permute.xlu0 %2167
        %s2170 = sor.u32 256, 96
        %2171 = vbcast.lane.b32.xlu0 %v2121, %s2170
        %v2172 = vpop.permute.xlu0 %2171
        %s2174 = sor.u32 256, 104
        %2175 = vbcast.lane.b32.xlu0 %v2121, %s2174
        %v2176 = vpop.permute.xlu0 %2175
        %s2178 = sor.u32 256, 112
        %2179 = vbcast.lane.b32.xlu0 %v2121, %s2178
        %v2180 = vpop.permute.xlu0 %2179
        %s2182 = sor.u32 256, 120
        %2183 = vbcast.lane.b32.xlu0 %v2121, %s2182
        %v2184 = vpop.permute.xlu0 %2183
        %v2185 = vmul.f32 %v1655, %v303
        %v2186 = vmul.f32 %v1659, %v304
        %v2187 = vmul.f32 %v1663, %v305
        %v2188 = vmul.f32 %v1667, %v306
        %v2189 = vmul.f32 %v1671, %v307
        %v2190 = vmul.f32 %v1675, %v308
        %v2191 = vmul.f32 %v1679, %v309
        %v2192 = vmul.f32 %v1683, %v310
        %v2193 = vmul.f32 %v1687, %v311
        %v2194 = vmul.f32 %v1691, %v312
        %v2195 = vmul.f32 %v1695, %v313
        %v2196 = vmul.f32 %v1699, %v314
        %v2197 = vmul.f32 %v1703, %v315
        %v2198 = vmul.f32 %v1707, %v316
        %v2199 = vmul.f32 %v1711, %v317
        %v2200 = vmul.f32 %v1715, %v318
        %v2201 = vmul.f32 %v1722, %v319
        %v2202 = vmul.f32 %v1726, %v320
        %v2203 = vmul.f32 %v1730, %v321
        %v2204 = vmul.f32 %v1734, %v322
        %v2205 = vmul.f32 %v1738, %v323
        %v2206 = vmul.f32 %v1742, %v324
        %v2207 = vmul.f32 %v1746, %v325
        %v2208 = vmul.f32 %v1750, %v326
        %v2209 = vmul.f32 %v1754, %v327
        %v2210 = vmul.f32 %v1758, %v328
        %v2211 = vmul.f32 %v1762, %v329
        %v2212 = vmul.f32 %v1766, %v330
        %v2213 = vmul.f32 %v1770, %v331
        %v2214 = vmul.f32 %v1774, %v332
        %v2215 = vmul.f32 %v1778, %v333
        %v2216 = vmul.f32 %v1782, %v334
        %v2217 = vmul.f32 %v1789, %v335
        %v2218 = vmul.f32 %v1793, %v336
        %v2219 = vmul.f32 %v1797, %v337
        %v2220 = vmul.f32 %v1801, %v338
        %v2221 = vmul.f32 %v1805, %v339
        %v2222 = vmul.f32 %v1809, %v340
        %v2223 = vmul.f32 %v1813, %v341
        %v2224 = vmul.f32 %v1817, %v342
        %v2225 = vmul.f32 %v1821, %v343
        %v2226 = vmul.f32 %v1825, %v344
        %v2227 = vmul.f32 %v1829, %v345
        %v2228 = vmul.f32 %v1833, %v346
        %v2229 = vmul.f32 %v1837, %v347
        %v2230 = vmul.f32 %v1841, %v348
        %v2231 = vmul.f32 %v1845, %v349
        %v2232 = vmul.f32 %v1849, %v350
        %v2233 = vmul.f32 %v1856, %v351
        %v2234 = vmul.f32 %v1860, %v352
        %v2235 = vmul.f32 %v1864, %v353
        %v2236 = vmul.f32 %v1868, %v354
        %v2237 = vmul.f32 %v1872, %v355
        %v2238 = vmul.f32 %v1876, %v356
        %v2239 = vmul.f32 %v1880, %v357
        %v2240 = vmul.f32 %v1884, %v358
        %v2241 = vmul.f32 %v1888, %v359
        %v2242 = vmul.f32 %v1892, %v360
        %v2243 = vmul.f32 %v1896, %v361
        %v2244 = vmul.f32 %v1900, %v362
        %v2245 = vmul.f32 %v1904, %v363
        %v2246 = vmul.f32 %v1908, %v364
        %v2247 = vmul.f32 %v1912, %v365
        %v2248 = vmul.f32 %v1916, %v366
        %v2249 = vmul.f32 %v1923, %v367
        %v2250 = vmul.f32 %v1927, %v368
        %v2251 = vmul.f32 %v1931, %v369
        %v2252 = vmul.f32 %v1935, %v370
        %v2253 = vmul.f32 %v1939, %v371
        %v2254 = vmul.f32 %v1943, %v372
        %v2255 = vmul.f32 %v1947, %v373
        %v2256 = vmul.f32 %v1951, %v374
        %v2257 = vmul.f32 %v1955, %v375
        %v2258 = vmul.f32 %v1959, %v376
        %v2259 = vmul.f32 %v1963, %v377
        %v2260 = vmul.f32 %v1967, %v378
        %v2261 = vmul.f32 %v1971, %v379
        %v2262 = vmul.f32 %v1975, %v380
        %v2263 = vmul.f32 %v1979, %v381
        %v2264 = vmul.f32 %v1983, %v382
        %v2265 = vmul.f32 %v1990, %v383
        %v2266 = vmul.f32 %v1994, %v384
        %v2267 = vmul.f32 %v1998, %v385
        %v2268 = vmul.f32 %v2002, %v386
        %v2269 = vmul.f32 %v2006, %v387
        %v2270 = vmul.f32 %v2010, %v388
        %v2271 = vmul.f32 %v2014, %v389
        %v2272 = vmul.f32 %v2018, %v390
        %v2273 = vmul.f32 %v2022, %v391
        %v2274 = vmul.f32 %v2026, %v392
        %v2275 = vmul.f32 %v2030, %v393
        %v2276 = vmul.f32 %v2034, %v394
        %v2277 = vmul.f32 %v2038, %v395
        %v2278 = vmul.f32 %v2042, %v396
        %v2279 = vmul.f32 %v2046, %v397
        %v2280 = vmul.f32 %v2050, %v398
        %v2281 = vmul.f32 %v2057, %v399
        %v2282 = vmul.f32 %v2061, %v400
        %v2283 = vmul.f32 %v2065, %v401
        %v2284 = vmul.f32 %v2069, %v402
        %v2285 = vmul.f32 %v2073, %v403
        %v2286 = vmul.f32 %v2077, %v404
        %v2287 = vmul.f32 %v2081, %v405
        %v2288 = vmul.f32 %v2085, %v406
        %v2289 = vmul.f32 %v2089, %v407
        %v2290 = vmul.f32 %v2093, %v408
        %v2291 = vmul.f32 %v2097, %v409
        %v2292 = vmul.f32 %v2101, %v410
        %v2293 = vmul.f32 %v2105, %v411
        %v2294 = vmul.f32 %v2109, %v412
        %v2295 = vmul.f32 %v2113, %v413
        %v2296 = vmul.f32 %v2117, %v414
        %v2297 = vmul.f32 %v2124, %v415
        %v2298 = vmul.f32 %v2128, %v416
        %v2299 = vmul.f32 %v2132, %v417
        %v2300 = vmul.f32 %v2136, %v418
        %v2301 = vmul.f32 %v2140, %v419
        %v2302 = vmul.f32 %v2144, %v420
        %v2303 = vmul.f32 %v2148, %v421
        %v2304 = vmul.f32 %v2152, %v422
        %v2305 = vmul.f32 %v2156, %v423
        %v2306 = vmul.f32 %v2160, %v424
        %v2307 = vmul.f32 %v2164, %v425
        %v2308 = vmul.f32 %v2168, %v426
        %v2309 = vmul.f32 %v2172, %v427
        %v2310 = vmul.f32 %v2176, %v428
        %v2311 = vmul.f32 %v2180, %v429
        %v2312 = vmul.f32 %v2184, %v430
        %v2313 = vadd.f32 %v2185, %v2186
        %v2314 = vadd.f32 %v2313, %v2187
        %v2315 = vadd.f32 %v2314, %v2188
        %v2316 = vadd.f32 %v2315, %v2189
        %v2317 = vadd.f32 %v2316, %v2190
        %v2318 = vadd.f32 %v2317, %v2191
        %v2319 = vadd.f32 %v2318, %v2192
        %v2320 = vadd.f32 %v2319, %v2193
        %v2321 = vadd.f32 %v2320, %v2194
        %v2322 = vadd.f32 %v2321, %v2195
        %v2323 = vadd.f32 %v2322, %v2196
        %v2324 = vadd.f32 %v2323, %v2197
        %v2325 = vadd.f32 %v2324, %v2198
        %v2326 = vadd.f32 %v2325, %v2199
        %v2327 = vadd.f32 %v2326, %v2200
        %v2328 = vrot.slane %v2327, 4
        %v2329 = vadd.f32 %v2327, %v2328
        %v2330 = vrot.slane %v2329, 2
        %v2331 = vadd.f32 %v2329, %v2330
        %v2332 = vrot.slane %v2331, 1
        %v2333 = vadd.f32 %v2331, %v2332
        %v2334 = vadd.f32 %v2201, %v2202
        %v2335 = vadd.f32 %v2334, %v2203
        %v2336 = vadd.f32 %v2335, %v2204
        %v2337 = vadd.f32 %v2336, %v2205
        %v2338 = vadd.f32 %v2337, %v2206
        %v2339 = vadd.f32 %v2338, %v2207
        %v2340 = vadd.f32 %v2339, %v2208
        %v2341 = vadd.f32 %v2340, %v2209
        %v2342 = vadd.f32 %v2341, %v2210
        %v2343 = vadd.f32 %v2342, %v2211
        %v2344 = vadd.f32 %v2343, %v2212
        %v2345 = vadd.f32 %v2344, %v2213
        %v2346 = vadd.f32 %v2345, %v2214
        %v2347 = vadd.f32 %v2346, %v2215
        %v2348 = vadd.f32 %v2347, %v2216
        %v2349 = vrot.slane %v2348, 4
        %v2350 = vadd.f32 %v2348, %v2349
        %v2351 = vrot.slane %v2350, 2
        %v2352 = vadd.f32 %v2350, %v2351
        %v2353 = vrot.slane %v2352, 1
        %v2354 = vadd.f32 %v2352, %v2353
        %v2355 = vadd.f32 %v2217, %v2218
        %v2356 = vadd.f32 %v2355, %v2219
        %v2357 = vadd.f32 %v2356, %v2220
        %v2358 = vadd.f32 %v2357, %v2221
        %v2359 = vadd.f32 %v2358, %v2222
        %v2360 = vadd.f32 %v2359, %v2223
        %v2361 = vadd.f32 %v2360, %v2224
        %v2362 = vadd.f32 %v2361, %v2225
        %v2363 = vadd.f32 %v2362, %v2226
        %v2364 = vadd.f32 %v2363, %v2227
        %v2365 = vadd.f32 %v2364, %v2228
        %v2366 = vadd.f32 %v2365, %v2229
        %v2367 = vadd.f32 %v2366, %v2230
        %v2368 = vadd.f32 %v2367, %v2231
        %v2369 = vadd.f32 %v2368, %v2232
        %v2370 = vrot.slane %v2369, 4
        %v2371 = vadd.f32 %v2369, %v2370
        %v2372 = vrot.slane %v2371, 2
        %v2373 = vadd.f32 %v2371, %v2372
        %v2374 = vrot.slane %v2373, 1
        %v2375 = vadd.f32 %v2373, %v2374
        %v2376 = vadd.f32 %v2233, %v2234
        %v2377 = vadd.f32 %v2376, %v2235
        %v2378 = vadd.f32 %v2377, %v2236
        %v2379 = vadd.f32 %v2378, %v2237
        %v2380 = vadd.f32 %v2379, %v2238
        %v2381 = vadd.f32 %v2380, %v2239
        %v2382 = vadd.f32 %v2381, %v2240
        %v2383 = vadd.f32 %v2382, %v2241
        %v2384 = vadd.f32 %v2383, %v2242
        %v2385 = vadd.f32 %v2384, %v2243
        %v2386 = vadd.f32 %v2385, %v2244
        %v2387 = vadd.f32 %v2386, %v2245
        %v2388 = vadd.f32 %v2387, %v2246
        %v2389 = vadd.f32 %v2388, %v2247
        %v2390 = vadd.f32 %v2389, %v2248
        %v2391 = vrot.slane %v2390, 4
        %v2392 = vadd.f32 %v2390, %v2391
        %v2393 = vrot.slane %v2392, 2
        %v2394 = vadd.f32 %v2392, %v2393
        %v2395 = vrot.slane %v2394, 1
        %v2396 = vadd.f32 %v2394, %v2395
        %v2397 = vadd.f32 %v2249, %v2250
        %v2398 = vadd.f32 %v2397, %v2251
        %v2399 = vadd.f32 %v2398, %v2252
        %v2400 = vadd.f32 %v2399, %v2253
        %v2401 = vadd.f32 %v2400, %v2254
        %v2402 = vadd.f32 %v2401, %v2255
        %v2403 = vadd.f32 %v2402, %v2256
        %v2404 = vadd.f32 %v2403, %v2257
        %v2405 = vadd.f32 %v2404, %v2258
        %v2406 = vadd.f32 %v2405, %v2259
        %v2407 = vadd.f32 %v2406, %v2260
        %v2408 = vadd.f32 %v2407, %v2261
        %v2409 = vadd.f32 %v2408, %v2262
        %v2410 = vadd.f32 %v2409, %v2263
        %v2411 = vadd.f32 %v2410, %v2264
        %v2412 = vrot.slane %v2411, 4
        %v2413 = vadd.f32 %v2411, %v2412
        %v2414 = vrot.slane %v2413, 2
        %v2415 = vadd.f32 %v2413, %v2414
        %v2416 = vrot.slane %v2415, 1
        %v2417 = vadd.f32 %v2415, %v2416
        %v2418 = vadd.f32 %v2265, %v2266
        %v2419 = vadd.f32 %v2418, %v2267
        %v2420 = vadd.f32 %v2419, %v2268
        %v2421 = vadd.f32 %v2420, %v2269
        %v2422 = vadd.f32 %v2421, %v2270
        %v2423 = vadd.f32 %v2422, %v2271
        %v2424 = vadd.f32 %v2423, %v2272
        %v2425 = vadd.f32 %v2424, %v2273
        %v2426 = vadd.f32 %v2425, %v2274
        %v2427 = vadd.f32 %v2426, %v2275
        %v2428 = vadd.f32 %v2427, %v2276
        %v2429 = vadd.f32 %v2428, %v2277
        %v2430 = vadd.f32 %v2429, %v2278
        %v2431 = vadd.f32 %v2430, %v2279
        %v2432 = vadd.f32 %v2431, %v2280
        %v2433 = vrot.slane %v2432, 4
        %v2434 = vadd.f32 %v2432, %v2433
        %v2435 = vrot.slane %v2434, 2
        %v2436 = vadd.f32 %v2434, %v2435
        %v2437 = vrot.slane %v2436, 1
        %v2438 = vadd.f32 %v2436, %v2437
        %v2439 = vadd.f32 %v2281, %v2282
        %v2440 = vadd.f32 %v2439, %v2283
        %v2441 = vadd.f32 %v2440, %v2284
        %v2442 = vadd.f32 %v2441, %v2285
        %v2443 = vadd.f32 %v2442, %v2286
        %v2444 = vadd.f32 %v2443, %v2287
        %v2445 = vadd.f32 %v2444, %v2288
        %v2446 = vadd.f32 %v2445, %v2289
        %v2447 = vadd.f32 %v2446, %v2290
        %v2448 = vadd.f32 %v2447, %v2291
        %v2449 = vadd.f32 %v2448, %v2292
        %v2450 = vadd.f32 %v2449, %v2293
        %v2451 = vadd.f32 %v2450, %v2294
        %v2452 = vadd.f32 %v2451, %v2295
        %v2453 = vadd.f32 %v2452, %v2296
        %v2454 = vrot.slane %v2453, 4
        %v2455 = vadd.f32 %v2453, %v2454
        %v2456 = vrot.slane %v2455, 2
        %v2457 = vadd.f32 %v2455, %v2456
        %v2458 = vrot.slane %v2457, 1
        %v2459 = vadd.f32 %v2457, %v2458
        %v2460 = vadd.f32 %v2297, %v2298
        %v2461 = vadd.f32 %v2460, %v2299
        %v2462 = vadd.f32 %v2461, %v2300
        %v2463 = vadd.f32 %v2462, %v2301
        %v2464 = vadd.f32 %v2463, %v2302
        %v2465 = vadd.f32 %v2464, %v2303
        %v2466 = vadd.f32 %v2465, %v2304
        %v2467 = vadd.f32 %v2466, %v2305
        %v2468 = vadd.f32 %v2467, %v2306
        %v2469 = vadd.f32 %v2468, %v2307
        %v2470 = vadd.f32 %v2469, %v2308
        %v2471 = vadd.f32 %v2470, %v2309
        %v2472 = vadd.f32 %v2471, %v2310
        %v2473 = vadd.f32 %v2472, %v2311
        %v2474 = vadd.f32 %v2473, %v2312
        %v2475 = vrot.slane %v2474, 4
        %v2476 = vadd.f32 %v2474, %v2475
        %v2477 = vrot.slane %v2476, 2
        %v2478 = vadd.f32 %v2476, %v2477
        %v2479 = vrot.slane %v2478, 1
        %v2480 = vadd.f32 %v2478, %v2479
        %v2489 = vsel %vm1618, %v2354, %v2333
        %v2490 = vsel %vm1620, %v2375, %v2489
        %v2491 = vsel %vm1622, %v2396, %v2490
        %v2492 = vsel %vm1624, %v2417, %v2491
        %v2493 = vsel %vm1626, %v2438, %v2492
        %v2494 = vsel %vm1628, %v2459, %v2493
        %v2495 = vsel %vm1630, %v2480, %v2494
        %2497 = vst [vmem:[%s284] sm:$0xff] %v2495
        %s2498 = sand.u32 %s110, 1
        %s2499 = scalar_lea.sflag [#allocation4], %s2498
        %s2500 = sand.u32 %s110, 1
        %s2501 = smul.addr %s2500, 8
        %s2502 = scalar_lea.vmem [#allocation7], %s2501
        %s2503 = sand.u32 %s136, 1
        %s2504 = scalar_lea.sflag [#allocation9], %s2503
        %s2505 = sand.u32 %s136, 1
        %s2506 = smul.addr %s2505, 8
        %s2507 = scalar_lea.vmem [#allocation8], %s2506
        %p2508 = scmp.lt.s32.totalorder %s29, 1
        %s2509 = scalar_select %p2508, %s29, 1
        %s2510 = smul.addr %s2509, 8
        %s2511 = scalar_lea.vmem %s5, %s2510
        // Predicated region
        $region41: #{tpu_custom_call.1} parent=31 // pred_check
          %p2512 = pneg %p120
        $region42: #{tpu_custom_call.1} parent=31 // pred_check_branch
          %2514 = sbr.rel (%p2512) target = $region44
        $region43: #{tpu_custom_call.1} parent=31 // pred_region
          %s2516 = ssub.s32 128, 128
          %2517 = vsyncadd %s2499, %s2516
          %s2518 = smul.addr %s29, 128
          %s2519 = scalar_lea.hbm %s3, %s2518
          %s2521 = sshll.u32 %s2502, 4
          %s2522 = int_to_ptr.vmem [resolvable:$true] %s2521
          %2524 = dma.vmem_to_hbm [thread:$0]  %s2522, 128, %s2519, %s2499
        $region44: #{tpu_custom_call.1} parent=31 // pred_fallthru
          _
        // Predicated region
        $region45: #{tpu_custom_call.1} parent=31 // pred_check
          %p2525 = pneg %p146
        $region46: #{tpu_custom_call.1} parent=31 // pred_check_branch
          %2527 = sbr.rel (%p2525) target = $region48
        $region47: #{tpu_custom_call.1} parent=31 // pred_region
          %s2529 = ssub.s32 128, 128
          %2530 = vsyncadd %s2504, %s2529
          %s2531 = smul.addr %s29, 128
          %s2532 = scalar_lea.hbm %s4, %s2531
          %s2534 = sshll.u32 %s2507, 4
          %s2535 = int_to_ptr.vmem [resolvable:$true] %s2534
          %2537 = dma.vmem_to_hbm [thread:$0]  %s2535, 128, %s2532, %s2504
        $region48: #{tpu_custom_call.1} parent=31 // pred_fallthru
          _
        // Predicated region
        $region49: #{tpu_custom_call.1} parent=31 // pred_check
          %p2538 = pneg %p172
        $region50: #{tpu_custom_call.1} parent=31 // pred_check_branch
          %2540 = sbr.rel (%p2538) target = $region52
        $region51: #{tpu_custom_call.1} parent=31 // pred_region
          _
        $region52: #{tpu_custom_call.1} parent=31 // pred_fallthru
          _
      $region32: #{tpu_custom_call.1} parent=5 // pred_fallthru
        _
      %p2541 = scmp.le.s32.totalorder 2, %s24
      // Predicated region
      $region53: #{tpu_custom_call.1} parent=5 // pred_check
        %p2542 = pneg %p2541
      $region54: #{tpu_custom_call.1} parent=5 // pred_check_branch
        %2544 = sbr.rel (%p2542) target = $region56
      $region55: #{tpu_custom_call.1} parent=5 // pred_region
        %s2545 = ssub.s32 %s24, 2
        // Predicated region
        $region57: #{tpu_custom_call.1} parent=55 // pred_check
          %p2546 = pneg %p126
        $region58: #{tpu_custom_call.1} parent=55 // pred_check_branch
          %2548 = sbr.rel (%p2546) target = $region60
        $region59: #{tpu_custom_call.1} parent=55 // pred_region
          %s2549 = sand.u32 %s111, 1
          %s2550 = scalar_lea.sflag [#allocation4], %s2549
          %s2551 = sand.u32 %s111, 1
          %s2552 = smul.addr %s2551, 8
          %s2553 = scalar_lea.vmem [#allocation7], %s2552
          %2554 = dma.done %s2550, 128
        $region60: #{tpu_custom_call.1} parent=55 // pred_fallthru
          _
        // Predicated region
        $region61: #{tpu_custom_call.1} parent=55 // pred_check
          %p2555 = pneg %p152
        $region62: #{tpu_custom_call.1} parent=55 // pred_check_branch
          %2557 = sbr.rel (%p2555) target = $region64
        $region63: #{tpu_custom_call.1} parent=55 // pred_region
          %s2558 = sand.u32 %s137, 1
          %s2559 = scalar_lea.sflag [#allocation9], %s2558
          %s2560 = sand.u32 %s137, 1
          %s2561 = smul.addr %s2560, 8
          %s2562 = scalar_lea.vmem [#allocation8], %s2561
          %2563 = dma.done %s2559, 128
        $region64: #{tpu_custom_call.1} parent=55 // pred_fallthru
          _
        // Predicated region
        $region65: #{tpu_custom_call.1} parent=55 // pred_check
          %p2564 = pneg %p178
        $region66: #{tpu_custom_call.1} parent=55 // pred_check_branch
          %2566 = sbr.rel (%p2564) target = $region68
        $region67: #{tpu_custom_call.1} parent=55 // pred_region
          %p2567 = scmp.lt.s32.totalorder %s30, 1
          %s2568 = scalar_select %p2567, %s30, 1
          %s2569 = smul.addr %s2568, 8
          %s2570 = scalar_lea.vmem %s5, %s2569
        $region68: #{tpu_custom_call.1} parent=55 // pred_fallthru
          _
      $region56: #{tpu_custom_call.1} parent=5 // pred_fallthru
        _
    $region6: #{tpu_custom_call.1} parent=1 // loop_footer
      %s28 = sadd.s32 1, %s24
    $region7: #{tpu_custom_call.1} parent=1 // loop_footer_branch
      %23 = sbr.rel target = $region3
    $region8: #{tpu_custom_call.1} parent=1 // loop_exit
      _
    %2571 = vsyncpa [#allocation3], 1
    %s2572 = scalar_lea.sflag [#allocation3], 1
    %2573 = vsyncpa %s2572, 1
    %2574 = vsyncpa [#allocation6], 1
    %s2575 = scalar_lea.sflag [#allocation6], 1
    %2576 = vsyncpa %s2575, 1
    %2577 = vsyncpa [#allocation4], 1
    %s2578 = scalar_lea.sflag [#allocation4], 1
    %2579 = vsyncpa %s2578, 1
    %2580 = vsyncpa [#allocation9], 1
    %s2581 = scalar_lea.sflag [#allocation9], 1
    %2582 = vsyncpa %s2581, 1

</llo_original>
